<compile_context>
chip_gen: v7x
topology: tpu7x:2x2x1
jax: 0.10.0
libtpu: 0.0.40
codegen_flags: <defaults>
</compile_context>

<pallas_src>
import functools

import jax
import jax.numpy as jnp
from jax.experimental import pallas as pl
from jax.experimental.pallas import tpu as pltpu


# ----------------------------------------------------------------------------
# helpers
# ----------------------------------------------------------------------------
def _round_up(x, m):
    return (x + m - 1) // m * m


def _pick_divisor_tile(dim, candidates):
    for c in candidates:
        if dim % c == 0:
            return c
    return candidates[-1]


def _pick_row_tile(m8):
    """Pick tm (multiple of 8) minimizing padded rows; prefer larger on ties."""
    if m8 <= 64:
        return m8, m8
    best_tm, best_mp = None, None
    for c in (1024, 512, 256, 128, 64):     # descending -> ties keep the larger
        mp = _round_up(m8, c)
        if best_mp is None or mp < best_mp:
            best_tm, best_mp = c, mp
    return best_tm, best_mp


def _compute_pad(k, s, dim_size):
    # Identical to Unit3D.compute_pad (TF-"SAME" style).
    if dim_size % s == 0:
        return max(k - s, 0)
    return max(k - dim_size % s, 0)


def _im2col_channels_last(xp_cl, ksize, stride):
    # TODO(synk): replace this HBM-materialized im2col with a tap-streamed pass 1
    # (keep xp_cl once in HBM, halo'd per-tile DMA + one matmul per tap into the
    # same acc_ref) to drop the kt*kh*kw-fold input-traffic inflation entirely.
    kt, kh, kw = ksize
    st, sh, sw = stride
    N, Tp, Hp, Wp, C = xp_cl.shape
    To = (Tp - kt) // st + 1
    Ho = (Hp - kh) // sh + 1
    Wo = (Wp - kw) // sw + 1
    cols = []
    for dt in range(kt):
        for dh in range(kh):
            for dw in range(kw):
                cols.append(xp_cl[:,
                                  dt:dt + st * To:st,
                                  dh:dh + sh * Ho:sh,
                                  dw:dw + sw * Wo:sw, :])
    # (N, To, Ho, Wo, taps, C) -> contiguous reshape: one materialization, in
    # the matmul dtype.  K is ordered (tap-major, channel-minor).
    p = jnp.stack(cols, axis=4)
    patches = p.reshape(N * To * Ho * Wo, kt * kh * kw * C)
    return patches, (To, Ho, Wo)


# ----------------------------------------------------------------------------
# Pass 1: tiled GEMM (+ optional bias/ReLU epilogue) + optional BN partial stats
# ----------------------------------------------------------------------------
def _conv_gemm_kernel(*refs, add_bias, fuse_relu, emit_stats):
    it = iter(refs)
    p_ref = next(it)
    w_ref = next(it)
    b_ref = next(it) if add_bias else None
    y_ref = next(it)
    sum_ref = next(it) if emit_stats else None
    sq_ref = next(it) if emit_stats else None
    acc_ref = next(it)

    k = pl.program_id(2)

    @pl.when(k == 0)
    def _init():
        acc_ref[...] = jnp.zeros_like(acc_ref)

    acc_ref[...] += jnp.dot(p_ref[...], w_ref[...],
                            preferred_element_type=jnp.float32)

    @pl.when(k == pl.num_programs(2) - 1)
    def _finalize():
        acc = acc_ref[...]                               # (tm, tn) f32
        tm, tn = acc.shape
        if emit_stats:
            # Lane-dense (8, tn) partial sums: reshape keeps the (8,128) tiling
            # intact, the leading-axis reduction is pure VPU adds.  Zero-padded
            # M rows / N columns contribute exactly 0.
            grouped = acc.reshape(tm // 8, 8, tn)
            sum_ref[...] = jnp.sum(grouped, axis=0)
            sq_ref[...] = jnp.sum(grouped * grouped, axis=0)
        out = acc
        if add_bias:        # only when BN is off (a constant cancels in BN)
            out = out + b_ref[...]
        if fuse_relu:       # only when BN is off
            out = jnp.maximum(out, 0.0)
        y_ref[...] = out.astype(y_ref.dtype)


# ----------------------------------------------------------------------------
# Pass 2: tiled BN affine (scale/shift precomputed) + ReLU
# ----------------------------------------------------------------------------
def _bn_act_kernel(y_ref, params_ref, o_ref, *, use_relu):
    scale = params_ref[0:1, :]                           # (1, tn)
    shift = params_ref[1:2, :]                           # (1, tn)
    out = y_ref[...].astype(jnp.float32) * scale + shift
    if use_relu:
        out = jnp.maximum(out, 0.0)
    o_ref[...] = out.astype(o_ref.dtype)


# ----------------------------------------------------------------------------
# wrapper
# ----------------------------------------------------------------------------
def unit3d_forward(x, weight, bias, gamma, beta, *,
                   kernel_size=(1, 1, 1), stride=(1, 1, 1),
                   use_batch_norm=True, use_bias=False, use_relu=True,
                   bn_eps=1e-3, matmul_dtype=jnp.bfloat16):
    """x: (N, Cin, T, H, W) f32; weight: (Cout, Cin, kt, kh, kw) f32."""
    N, C, T, H, W = x.shape
    Cout = weight.shape[0]
    kt, kh, kw = kernel_size

    # ---- TF-"SAME" padding (matches Unit3D.forward) --------------------------
    pad_t = _compute_pad(kt, stride[0], T)
    pad_h = _compute_pad(kh, stride[1], H)
    pad_w = _compute_pad(kw, stride[2], W)

    # Channels-last + matmul dtype BEFORE the taps-fold expansion: the im2col
    # below is the dominant HBM tensor, so build it directly in bf16.
    x_cl = jnp.transpose(x, (0, 2, 3, 4, 1)).astype(matmul_dtype)
    xp_cl = jnp.pad(x_cl, ((0, 0),
                           (pad_t // 2, pad_t - pad_t // 2),
                           (pad_h // 2, pad_h - pad_h // 2),
                           (pad_w // 2, pad_w - pad_w // 2),
                           (0, 0)))

    # ---- im2col -> GEMM shapes ----------------------------------------------
    patches, (To, Ho, Wo) = _im2col_channels_last(xp_cl, kernel_size, stride)
    M, K = patches.shape
    # Weight flattened with the same (tap-major, channel-minor) K ordering.
    w2 = jnp.transpose(weight, (0, 2, 3, 4, 1)).reshape(Cout, K).T      # (K, Cout)

    # ---- pad to lane/sublane-friendly, MXU-friendly shapes -------------------
    Np = _round_up(Cout, 128)               # lane-dense output columns
    tn = Np if Np <= 512 else _pick_divisor_tile(Np, (512, 256, 128))
    M8 = _round_up(M, 8)
    tm, Mp = _pick_row_tile(M8)             # minimize wasted M padding
    Kp = _round_up(K, 128)
    tk = _pick_divisor_tile(Kp, (512, 256, 128))
    gm, gn, gk = Mp // tm, Np // tn, Kp // tk

    pad_m, pad_k = Mp - M, Kp - K
    patches_p = patches                     # already matmul_dtype (bf16)
    if pad_m or pad_k:
        patches_p = jnp.pad(patches, ((0, pad_m), (0, pad_k)))
    w_p = jnp.pad(w2, ((0, pad_k), (0, Np - Cout))).astype(matmul_dtype)

    add_bias = use_bias and not use_batch_norm   # bias cancels in batch-stat BN
    fuse_relu = use_relu and not use_batch_norm
    emit_stats = use_batch_norm

    # y intermediate: store at matmul precision when BN follows (halves the
    # intermediate traffic); without BN this IS the output, keep f32.
    y_dtype = matmul_dtype if use_batch_norm else jnp.float32

    in_arrays = [patches_p, w_p]
    in_specs = [
        pl.BlockSpec((tm, tk), lambda i, j, k: (i, k)),
        pl.BlockSpec((tk, tn), lambda i, j, k: (k, j)),
    ]
    if add_bias:
        bias_p = jnp.pad(bias.astype(jnp.float32), (0, Np - Cout)).reshape(1, Np)
        in_arrays.append(bias_p)
        in_specs.append(pl.BlockSpec((1, tn), lambda i, j, k: (0, j)))

    out_specs = [pl.BlockSpec((tm, tn), lambda i, j, k: (i, j))]
    out_shapes = [jax.ShapeDtypeStruct((Mp, Np), y_dtype)]
    if emit_stats:
        out_specs += [pl.BlockSpec((8, tn), lambda i, j, k: (i, j)),
                      pl.BlockSpec((8, tn), lambda i, j, k: (i, j))]
        out_shapes += [jax.ShapeDtypeStruct((gm * 8, Np), jnp.float32),
                       jax.ShapeDtypeStruct((gm * 8, Np), jnp.float32)]

    op_bytes = jnp.dtype(matmul_dtype).itemsize
    y_bytes = jnp.dtype(y_dtype).itemsize
    cost1 = pl.CostEstimate(
        flops=2 * Mp * Kp * Np, transcendentals=0,
        bytes_accessed=Mp * Kp * op_bytes + Kp * Np * op_bytes + Mp * Np * y_bytes)

    res = pl.pallas_call(
        functools.partial(_conv_gemm_kernel, add_bias=add_bias,
                          fuse_relu=fuse_relu, emit_stats=emit_stats),
        grid=(gm, gn, gk),
        in_specs=in_specs,
        out_specs=tuple(out_specs) if emit_stats else out_specs[0],
        out_shape=tuple(out_shapes) if emit_stats else out_shapes[0],
        scratch_shapes=[pltpu.VMEM((tm, tn), jnp.float32)],
        compiler_params=pltpu.CompilerParams(
            dimension_semantics=("parallel", "parallel", "arbitrary"),
            vmem_limit_bytes=48 * 1024 * 1024),
        cost_estimate=cost1,
    )(*in_arrays)

    if use_batch_norm:
        y, psum, psq = res
        # Training-mode BatchNorm3d: biased batch statistics over N*T*H*W rows.
        # Padded rows/columns contributed exactly 0, so dividing by the true M
        # is correct.  NOTE: var = E[y^2]-E[y]^2 in f32 is cancellation-prone
        # when |mean| >> std; acceptable here since stats come from the f32 acc.
        total = jnp.sum(psum, axis=0)                     # (Np,)
        total_sq = jnp.sum(psq, axis=0)
        mean = total / M
        var = jnp.maximum(total_sq / M - mean * mean, 0.0)
        inv_std = jax.lax.rsqrt(var + bn_eps)
        gamma_p = jnp.pad(gamma.astype(jnp.float32), (0, Np - Cout))
        beta_p = jnp.pad(beta.astype(jnp.float32), (0, Np - Cout))
        scale = gamma_p * inv_std
        shift = beta_p - mean * scale
        # 8-sublane-padded fused param block (layout-friendly broadcast operand).
        params = jnp.zeros((8, Np), jnp.float32).at[0].set(scale).at[1].set(shift)

        cost2 = pl.CostEstimate(flops=3 * Mp * Np, transcendentals=0,
                                bytes_accessed=Mp * Np * (y_bytes + 4))
        out_mn = pl.pallas_call(
            functools.partial(_bn_act_kernel, use_relu=use_relu),
            grid=(gm, gn),
            in_specs=[
                pl.BlockSpec((tm, tn), lambda i, j: (i, j)),
                pl.BlockSpec((8, tn), lambda i, j: (0, j)),
            ],
            out_specs=pl.BlockSpec((tm, tn), lambda i, j: (i, j)),
            out_shape=jax.ShapeDtypeStruct((Mp, Np), jnp.float32),
            compiler_params=pltpu.CompilerParams(
                dimension_semantics=("parallel", "parallel"),
                vmem_limit_bytes=48 * 1024 * 1024),
            cost_estimate=cost2,
        )(y, params)
    else:
        out_mn = res        # bias / ReLU already fused into the pass-1 epilogue

    # (Mp, Np) -> valid (M, Cout) -> (N, To, Ho, Wo, Cout) -> NCDHW
    # TODO(synk): fold this slice + NCDHW transpose into pass 2's out BlockSpec
    # (per-batch row padding + in-kernel tile transpose) to drop one more
    # full-activation HBM pass.
    out = out_mn[:M, :Cout].reshape(N, To, Ho, Wo, Cout).transpose(0, 4, 1, 2, 3)
    return out


# ----------------------------------------------------------------------------
# Pure-JAX reference (for correctness check only)
# ----------------------------------------------------------------------------
def unit3d_reference(x, weight, bias, gamma, beta, *,
                     kernel_size, stride, use_batch_norm, use_bias, use_relu,
                     bn_eps=1e-3):
    kt, kh, kw = kernel_size
    N, C, T, H, W = x.shape
    pad_t = _compute_pad(kt, stride[0], T)
    pad_h = _compute_pad(kh, stride[1], H)
    pad_w = _compute_pad(kw, stride[2], W)
    pads = ((0, 0), (0, 0),
            (pad_t // 2, pad_t - pad_t // 2),
            (pad_h // 2, pad_h - pad_h // 2),
            (pad_w // 2, pad_w - pad_w // 2))
    xp = jnp.pad(x, pads)
    y = jax.lax.conv_general_dilated(
        xp, weight, window_strides=stride, padding='VALID',
        dimension_numbers=('NCDHW', 'OIDHW', 'NCDHW'))
    if use_bias:
        y = y + bias.reshape(1, -1, 1, 1, 1)
    if use_batch_norm:
        mean = jnp.mean(y, axis=(0, 2, 3, 4), keepdims=True)
        var = jnp.mean((y - mean) ** 2, axis=(0, 2, 3, 4), keepdims=True)
        y = (y - mean) * jax.lax.rsqrt(var + bn_eps)
        y = y * gamma.reshape(1, -1, 1, 1, 1) + beta.reshape(1, -1, 1, 1, 1)
    if use_relu:
        y = jnp.maximum(y, 0.0)
    return y


# ----------------------------------------------------------------------------
if __name__ == "__main__":
    def _run_case(x, weight, bias, gamma, beta, *, kernel_size, stride,
                  use_batch_norm, use_bias, use_relu, matmul_dtype, tol):
        out = unit3d_forward(x, weight, bias, gamma, beta,
                             kernel_size=kernel_size, stride=stride,
                             use_batch_norm=use_batch_norm, use_bias=use_bias,
                             use_relu=use_relu, matmul_dtype=matmul_dtype)
        out = jax.block_until_ready(out)
        ref = unit3d_reference(x, weight, bias, gamma, beta,
                               kernel_size=kernel_size, stride=stride,
                               use_batch_norm=use_batch_norm, use_bias=use_bias,
                               use_relu=use_relu)
        ref = jax.block_until_ready(ref)
        assert out.shape == ref.shape, (out.shape, ref.shape)
        max_err = float(jnp.max(jnp.abs(out - ref)))
        assert jnp.allclose(out, ref, atol=tol, rtol=tol), (
            use_batch_norm, use_bias, str(matmul_dtype), max_err)

    in_channels, out_channels = 4, 8
    kernel_size = (3, 3, 3)

    key = jax.random.PRNGKey(0)
    kx, kw_, kb, kg, kbt, kx2 = jax.random.split(key, 6)
    x = jax.random.normal(kx, (2, in_channels, 4, 8, 8), dtype=jnp.float32)
    weight = jax.random.normal(
        kw_, (out_channels, in_channels) + kernel_size, dtype=jnp.float32) * 0.1
    bias = jax.random.normal(kb, (out_channels,), dtype=jnp.float32) * 0.1
    gamma = 1.0 + 0.1 * jax.random.normal(kg, (out_channels,), dtype=jnp.float32)
    beta = 0.1 * jax.random.normal(kbt, (out_channels,), dtype=jnp.float32)

    # Unit3D defaults (BN + ReLU, no bias), bf16 MXU path + bf16 y intermediate.
    _run_case(x, weight, bias, gamma, beta, kernel_size=kernel_size,
              stride=(1, 1, 1), use_batch_norm=True, use_bias=False,
              use_relu=True, matmul_dtype=jnp.bfloat16, tol=3e-2)
    # Strict f32 check (BN path, f32 matmul + f32 intermediate).
    _run_case(x, weight, bias, gamma, beta, kernel_size=kernel_size,
              stride=(1, 1, 1), use_batch_norm=True, use_bias=False,
              use_relu=True, matmul_dtype=jnp.float32, tol=2e-3)
    # Conv + bias + ReLU, no BN (stats path disabled, bias/ReLU fused in pass 1).
    _run_case(x, weight, bias, gamma, beta, kernel_size=kernel_size,
              stride=(1, 1, 1), use_batch_norm=False, use_bias=True,
              use_relu=True, matmul_dtype=jnp.float32, tol=2e-3)
    # Strided conv with ragged M (exercises M/K zero-padding incl. BN stats).
    x2 = jax.random.normal(kx2, (2, in_channels, 5, 9, 9), dtype=jnp.float32)
    _run_case(x2, weight, bias, gamma, beta, kernel_size=kernel_size,
              stride=(1, 2, 2), use_batch_norm=True, use_bias=False,
              use_relu=True, matmul_dtype=jnp.float32, tol=2e-3)

    print("KERNEL_OK")
</pallas_src>

<mosaic_0001>
module attributes {stable_mosaic.version = 11 : i64} {
  func.func @_conv_gemm_kernel(%arg0: i32, %arg1: i32, %arg2: i32, %arg3: memref<512x128xbf16, #tpu.memory_space<vmem>>, %arg4: memref<128x128xbf16, #tpu.memory_space<vmem>>, %arg5: memref<512x128xbf16, #tpu.memory_space<vmem>>, %arg6: memref<8x128xf32, #tpu.memory_space<vmem>>, %arg7: memref<8x128xf32, #tpu.memory_space<vmem>>, %arg8: memref<512x128xf32, #tpu.memory_space<vmem>>) attributes {dimension_semantics = [#tpu.dimension_semantics<parallel>, #tpu.dimension_semantics<parallel>, #tpu.dimension_semantics<arbitrary>], iteration_bounds = array<i64: 1, 1, 1>, scalar_prefetch = 0 : i64, scratch_operands = 1 : i64, tpu.core_type = #tpu.core_type<tc>, window_params = [{transform_indices = @transform_0, window_bounds = array<i64: 512, 128>}, {transform_indices = @transform_1, window_bounds = array<i64: 128, 128>}, {transform_indices = @transform_2, window_bounds = array<i64: 512, 128>}, {transform_indices = @transform_3, window_bounds = array<i64: 8, 128>}, {transform_indices = @transform_4, window_bounds = array<i64: 8, 128>}]} {
    %c0_i32 = arith.constant 0 : i32
    %0 = arith.cmpi eq, %arg2, %c0_i32 : i32
    %1 = arith.extui %0 : i1 to i32
    %c0_i32_0 = arith.constant 0 : i32
    %2 = arith.cmpi ne, %1, %c0_i32_0 : i32
    scf.if %2 {
      %cst_10 = arith.constant 0.000000e+00 : f32
      %12 = vector.broadcast %cst_10 : f32 to vector<512x128xf32>
      %c0_11 = arith.constant 0 : index
      %c0_12 = arith.constant 0 : index
      %13 = vector.load %arg8[%c0_11, %c0_12] : memref<512x128xf32, #tpu.memory_space<vmem>>, vector<512x128xf32>
      tpu.vector_store %arg8[%c0_11, %c0_12], %12 {strides = array<i32>} : memref<512x128xf32, #tpu.memory_space<vmem>>, vector<512x128xf32>,
    } else {
    }
    %c0 = arith.constant 0 : index
    %c0_1 = arith.constant 0 : index
    %3 = vector.load %arg8[%c0, %c0_1] : memref<512x128xf32, #tpu.memory_space<vmem>>, vector<512x128xf32>
    %c0_2 = arith.constant 0 : index
    %c0_3 = arith.constant 0 : index
    %4 = vector.load %arg3[%c0_2, %c0_3] : memref<512x128xbf16, #tpu.memory_space<vmem>>, vector<512x128xbf16>
    %c0_4 = arith.constant 0 : index
    %c0_5 = arith.constant 0 : index
    %5 = vector.load %arg4[%c0_4, %c0_5] : memref<128x128xbf16, #tpu.memory_space<vmem>>, vector<128x128xbf16>
    %cst = arith.constant dense<0.000000e+00> : vector<512x128xf32>
    %6 = tpu.matmul %4, %5, %cst {dimension_numbers = #tpu.dot_dimension_numbers<[1], [0], [0], [1], [0, 0, 1, 1], [], []>} : vector<512x128xbf16>, vector<128x128xbf16>, vector<512x128xf32> -> vector<512x128xf32>
    %7 = arith.addf %3, %6 : vector<512x128xf32>
    %c0_6 = arith.constant 0 : index
    %c0_7 = arith.constant 0 : index
    %8 = vector.load %arg8[%c0_6, %c0_7] : memref<512x128xf32, #tpu.memory_space<vmem>>, vector<512x128xf32>
    tpu.vector_store %arg8[%c0_6, %c0_7], %7 {strides = array<i32>} : memref<512x128xf32, #tpu.memory_space<vmem>>, vector<512x128xf32>,
    %c0_i32_8 = arith.constant 0 : i32
    %9 = arith.cmpi eq, %arg2, %c0_i32_8 : i32
    %10 = arith.extui %9 : i1 to i32
    %c0_i32_9 = arith.constant 0 : i32
    %11 = arith.cmpi ne, %10, %c0_i32_9 : i32
    scf.if %11 {
      %c0_10 = arith.constant 0 : index
      %c0_11 = arith.constant 0 : index
      %12 = vector.load %arg8[%c0_10, %c0_11] : memref<512x128xf32, #tpu.memory_space<vmem>>, vector<512x128xf32>
      %13 = vector.shape_cast %12 : vector<512x128xf32> to vector<64x8x128xf32>
      %cst_12 = arith.constant dense<0.000000e+00> : vector<8x128xf32>
      %14 = vector.multi_reduction <add>, %13, %cst_12 [0] : vector<64x8x128xf32> to vector<8x128xf32>
      %c0_13 = arith.constant 0 : index
      %c0_14 = arith.constant 0 : index
      %15 = vector.load %arg6[%c0_13, %c0_14] : memref<8x128xf32, #tpu.memory_space<vmem>>, vector<8x128xf32>
      tpu.vector_store %arg6[%c0_13, %c0_14], %14 {strides = array<i32>} : memref<8x128xf32, #tpu.memory_space<vmem>>, vector<8x128xf32>,
      %16 = arith.mulf %13, %13 : vector<64x8x128xf32>
      %cst_15 = arith.constant dense<0.000000e+00> : vector<8x128xf32>
      %17 = vector.multi_reduction <add>, %16, %cst_15 [0] : vector<64x8x128xf32> to vector<8x128xf32>
      %c0_16 = arith.constant 0 : index
      %c0_17 = arith.constant 0 : index
      %18 = vector.load %arg7[%c0_16, %c0_17] : memref<8x128xf32, #tpu.memory_space<vmem>>, vector<8x128xf32>
      tpu.vector_store %arg7[%c0_16, %c0_17], %17 {strides = array<i32>} : memref<8x128xf32, #tpu.memory_space<vmem>>, vector<8x128xf32>,
      %19 = arith.truncf %12 : vector<512x128xf32> to vector<512x128xbf16>
      %c0_18 = arith.constant 0 : index
      %c0_19 = arith.constant 0 : index
      %20 = vector.load %arg5[%c0_18, %c0_19] : memref<512x128xbf16, #tpu.memory_space<vmem>>, vector<512x128xbf16>
      tpu.vector_store %arg5[%c0_18, %c0_19], %19 {strides = array<i32>} : memref<512x128xbf16, #tpu.memory_space<vmem>>, vector<512x128xbf16>,
    } else {
    }
    return
  }
  func.func @transform_0(%arg0: i32, %arg1: i32, %arg2: i32) -> (i32, i32) {
    %c0_i32 = arith.constant 0 : i32
    return %arg0, %arg2 : i32, i32
  }
  func.func @transform_1(%arg0: i32, %arg1: i32, %arg2: i32) -> (i32, i32) {
    %c0_i32 = arith.constant 0 : i32
    return %arg2, %arg1 : i32, i32
  }
  func.func @transform_2(%arg0: i32, %arg1: i32, %arg2: i32) -> (i32, i32) {
    %c0_i32 = arith.constant 0 : i32
    return %arg0, %arg1 : i32, i32
  }
  func.func @transform_3(%arg0: i32, %arg1: i32, %arg2: i32) -> (i32, i32) {
    %c0_i32 = arith.constant 0 : i32
    return %arg0, %arg1 : i32, i32
  }
  func.func @transform_4(%arg0: i32, %arg1: i32, %arg2: i32) -> (i32, i32) {
    %c0_i32 = arith.constant 0 : i32
    return %arg0, %arg1 : i32, i32
  }
}

</mosaic_0001>

<llo_original>
// kernel: tpu_custom_call.1
$region0: #{tpu_custom_call.1}
  #allocation0 [shape = 'u32[]', space=smem, size = 0x4, offset = 0x4, fixed_abs, tag = 'smem constant byte address 0x4 - core index']
  #allocation1 [shape = 'u32[144,128]{1,0:T(1,128)}', space=vmem, size = 0x12000, scoped, tag = 'internal scratch']
  #allocation2 [shape = 'f32[512,128]{1,0:T(8,128)}', space=vmem, size = 0x40000, scoped, tag = 'scratch operand']
  %s0 = inlined_call_operand.hbm [shape: bf16[512,128], index: 0, kind: input, shape index: {}]
  %s1 = inlined_call_operand.hbm [shape: bf16[128,128], index: 1, kind: input, shape index: {}]
  %s2 = inlined_call_operand.hbm [shape: bf16[512,128], index: 2, kind: output, shape index: {0}]
  %s3 = inlined_call_operand.hbm [shape: f32[8,128], index: 3, kind: output, shape index: {1}]
  %s4 = inlined_call_operand.hbm [shape: f32[8,128], index: 4, kind: output, shape index: {2}]
  %5 = xla_tuple %s2, %s3, %s4
  %s6 = sld [smem:[#allocation0]]
  $region50: #{tpu_custom_call.1} parent=0
    _
  %s8 = ssub.s32 1, %s6
  %s9 = scalar_select 0, %s8, %s6
  $region1: #{tpu_custom_call.1} parent=0
    #allocation3 [shape = 'u8[131072]{0}', space=vmem, size = 0x20000, scoped, tag = 'input window, operand 0, single buffered']
    #allocation4 [shape = 's32[1]{0}', space=sflag, size = 0x4, scoped, tag = 'scoped memory for tpu_custom_call.1']
    #allocation5 [shape = 's32[1]{0}', space=sflag, size = 0x4, scoped, tag = 'scoped memory for tpu_custom_call.1']
    #allocation6 [shape = 'u8[32768]{0}', space=vmem, size = 0x8000, scoped, tag = 'input window, operand 1, single buffered']
    #allocation7 [shape = 's32[1]{0}', space=sflag, size = 0x4, scoped, tag = 'scoped memory for tpu_custom_call.1']
    #allocation8 [shape = 'u8[131072]{0}', space=vmem, size = 0x20000, scoped, tag = 'output window, operand 0, single buffered']
    #allocation9 [shape = 'u8[4096]{0}', space=vmem, size = 0x1000, scoped, tag = 'output window, operand 1, single buffered']
    #allocation10 [shape = 's32[1]{0}', space=sflag, size = 0x4, scoped, tag = 'scoped memory for tpu_custom_call.1']
    #allocation11 [shape = 'u8[4096]{0}', space=vmem, size = 0x1000, scoped, tag = 'output window, operand 2, single buffered']
    %10 = vsyncpa [#allocation4], 0
    %11 = vsyncpa [#allocation7], 0
    %12 = vsyncpa [#allocation5], 0
    %13 = vsyncpa [#allocation10], 0
    // Predicated region
    $region2: #{tpu_custom_call.1} parent=1 // pred_check
      _
    $region3: #{tpu_custom_call.1} parent=1 // pred_check_branch
      %15 = sbr.rel (0) target = $region5
    $region4: #{tpu_custom_call.1} parent=1 // pred_region
      %s17 = ssub.s32 4096, 4096
      %18 = vsyncadd [#allocation4], %s17
      %s19 = sshll.u32 [#allocation3], 4
      %s20 = int_to_ptr.vmem [resolvable:$true] %s19
      %25 = dma.hbm_to_vmem [thread:$0]  %s0, 4096, %s20, [#allocation4], 64, 64, 4
    $region5: #{tpu_custom_call.1} parent=1 // pred_fallthru
      _
    // Predicated region
    $region6: #{tpu_custom_call.1} parent=1 // pred_check
      _
    $region7: #{tpu_custom_call.1} parent=1 // pred_check_branch
      %27 = sbr.rel (0) target = $region9
    $region8: #{tpu_custom_call.1} parent=1 // pred_region
      %s29 = ssub.s32 1024, 1024
      %30 = vsyncadd [#allocation7], %s29
      %s31 = sshll.u32 [#allocation6], 4
      %s32 = int_to_ptr.vmem [resolvable:$true] %s31
      %37 = dma.hbm_to_vmem [thread:$0]  %s1, 1024, %s32, [#allocation7], 64, 64, 4
    $region9: #{tpu_custom_call.1} parent=1 // pred_fallthru
      _
    // Predicated region
    $region10: #{tpu_custom_call.1} parent=1 // pred_check
      _
    $region11: #{tpu_custom_call.1} parent=1 // pred_check_branch
      %39 = sbr.rel (0) target = $region13
    $region12: #{tpu_custom_call.1} parent=1 // pred_region
      %40 = dma.done [#allocation4], 4096
    $region13: #{tpu_custom_call.1} parent=1 // pred_fallthru
      _
    // Predicated region
    $region14: #{tpu_custom_call.1} parent=1 // pred_check
      _
    $region15: #{tpu_custom_call.1} parent=1 // pred_check_branch
      %42 = sbr.rel (0) target = $region17
    $region16: #{tpu_custom_call.1} parent=1 // pred_region
      %43 = dma.done [#allocation7], 1024
    $region17: #{tpu_custom_call.1} parent=1 // pred_fallthru
      _
    %p45 = scmp.eq.s32.totalorder 0, 0
    // Predicated region
    $region18: #{tpu_custom_call.1} parent=1 // pred_check
      %p46 = pneg %p45
    $region19: #{tpu_custom_call.1} parent=1 // pred_check_branch
      %48 = sbr.rel (%p46) target = $region21
    $region20: #{tpu_custom_call.1} parent=1 // pred_region
      %49 = vst [vmem:[#allocation2] sm:$0xff] 0.0
      %50 = vst [vmem:[#allocation2 + $0x8] sm:$0xff] 0.0
      %51 = vst [vmem:[#allocation2 + $0x10] sm:$0xff] 0.0
      %52 = vst [vmem:[#allocation2 + $0x18] sm:$0xff] 0.0
      %53 = vst [vmem:[#allocation2 + $0x20] sm:$0xff] 0.0
      %54 = vst [vmem:[#allocation2 + $0x28] sm:$0xff] 0.0
      %55 = vst [vmem:[#allocation2 + $0x30] sm:$0xff] 0.0
      %56 = vst [vmem:[#allocation2 + $0x38] sm:$0xff] 0.0
      %57 = vst [vmem:[#allocation2 + $0x40] sm:$0xff] 0.0
      %58 = vst [vmem:[#allocation2 + $0x48] sm:$0xff] 0.0
      %59 = vst [vmem:[#allocation2 + $0x50] sm:$0xff] 0.0
      %60 = vst [vmem:[#allocation2 + $0x58] sm:$0xff] 0.0
      %61 = vst [vmem:[#allocation2 + $0x60] sm:$0xff] 0.0
      %62 = vst [vmem:[#allocation2 + $0x68] sm:$0xff] 0.0
      %63 = vst [vmem:[#allocation2 + $0x70] sm:$0xff] 0.0
      %64 = vst [vmem:[#allocation2 + $0x78] sm:$0xff] 0.0
      %65 = vst [vmem:[#allocation2 + $0x80] sm:$0xff] 0.0
      %66 = vst [vmem:[#allocation2 + $0x88] sm:$0xff] 0.0
      %67 = vst [vmem:[#allocation2 + $0x90] sm:$0xff] 0.0
      %68 = vst [vmem:[#allocation2 + $0x98] sm:$0xff] 0.0
      %69 = vst [vmem:[#allocation2 + $0xa0] sm:$0xff] 0.0
      %70 = vst [vmem:[#allocation2 + $0xa8] sm:$0xff] 0.0
      %71 = vst [vmem:[#allocation2 + $0xb0] sm:$0xff] 0.0
      %72 = vst [vmem:[#allocation2 + $0xb8] sm:$0xff] 0.0
      %73 = vst [vmem:[#allocation2 + $0xc0] sm:$0xff] 0.0
      %74 = vst [vmem:[#allocation2 + $0xc8] sm:$0xff] 0.0
      %75 = vst [vmem:[#allocation2 + $0xd0] sm:$0xff] 0.0
      %76 = vst [vmem:[#allocation2 + $0xd8] sm:$0xff] 0.0
      %77 = vst [vmem:[#allocation2 + $0xe0] sm:$0xff] 0.0
      %78 = vst [vmem:[#allocation2 + $0xe8] sm:$0xff] 0.0
      %79 = vst [vmem:[#allocation2 + $0xf0] sm:$0xff] 0.0
      %80 = vst [vmem:[#allocation2 + $0xf8] sm:$0xff] 0.0
      %81 = vst [vmem:[#allocation2 + $0x100] sm:$0xff] 0.0
      %82 = vst [vmem:[#allocation2 + $0x108] sm:$0xff] 0.0
      %83 = vst [vmem:[#allocation2 + $0x110] sm:$0xff] 0.0
      %84 = vst [vmem:[#allocation2 + $0x118] sm:$0xff] 0.0
      %85 = vst [vmem:[#allocation2 + $0x120] sm:$0xff] 0.0
      %86 = vst [vmem:[#allocation2 + $0x128] sm:$0xff] 0.0
      %87 = vst [vmem:[#allocation2 + $0x130] sm:$0xff] 0.0
      %88 = vst [vmem:[#allocation2 + $0x138] sm:$0xff] 0.0
      %89 = vst [vmem:[#allocation2 + $0x140] sm:$0xff] 0.0
      %90 = vst [vmem:[#allocation2 + $0x148] sm:$0xff] 0.0
      %91 = vst [vmem:[#allocation2 + $0x150] sm:$0xff] 0.0
      %92 = vst [vmem:[#allocation2 + $0x158] sm:$0xff] 0.0
      %93 = vst [vmem:[#allocation2 + $0x160] sm:$0xff] 0.0
      %94 = vst [vmem:[#allocation2 + $0x168] sm:$0xff] 0.0
      %95 = vst [vmem:[#allocation2 + $0x170] sm:$0xff] 0.0
      %96 = vst [vmem:[#allocation2 + $0x178] sm:$0xff] 0.0
      %97 = vst [vmem:[#allocation2 + $0x180] sm:$0xff] 0.0
      %98 = vst [vmem:[#allocation2 + $0x188] sm:$0xff] 0.0
      %99 = vst [vmem:[#allocation2 + $0x190] sm:$0xff] 0.0
      %100 = vst [vmem:[#allocation2 + $0x198] sm:$0xff] 0.0
      %101 = vst [vmem:[#allocation2 + $0x1a0] sm:$0xff] 0.0
      %102 = vst [vmem:[#allocation2 + $0x1a8] sm:$0xff] 0.0
      %103 = vst [vmem:[#allocation2 + $0x1b0] sm:$0xff] 0.0
      %104 = vst [vmem:[#allocation2 + $0x1b8] sm:$0xff] 0.0
      %105 = vst [vmem:[#allocation2 + $0x1c0] sm:$0xff] 0.0
      %106 = vst [vmem:[#allocation2 + $0x1c8] sm:$0xff] 0.0
      %107 = vst [vmem:[#allocation2 + $0x1d0] sm:$0xff] 0.0
      %108 = vst [vmem:[#allocation2 + $0x1d8] sm:$0xff] 0.0
      %109 = vst [vmem:[#allocation2 + $0x1e0] sm:$0xff] 0.0
      %110 = vst [vmem:[#allocation2 + $0x1e8] sm:$0xff] 0.0
      %111 = vst [vmem:[#allocation2 + $0x1f0] sm:$0xff] 0.0
      %112 = vst [vmem:[#allocation2 + $0x1f8] sm:$0xff] 0.0
    $region21: #{tpu_custom_call.1} parent=1 // pred_fallthru
      _
    %v113 = vld [vmem:[#allocation2] sm:$0xff]
    %v114 = vld [vmem:[#allocation2 + $0x8] sm:$0xff]
    %v115 = vld [vmem:[#allocation2 + $0x10] sm:$0xff]
    %v116 = vld [vmem:[#allocation2 + $0x18] sm:$0xff]
    %v117 = vld [vmem:[#allocation2 + $0x20] sm:$0xff]
    %v118 = vld [vmem:[#allocation2 + $0x28] sm:$0xff]
    %v119 = vld [vmem:[#allocation2 + $0x30] sm:$0xff]
    %v120 = vld [vmem:[#allocation2 + $0x38] sm:$0xff]
    %v121 = vld [vmem:[#allocation2 + $0x40] sm:$0xff]
    %v122 = vld [vmem:[#allocation2 + $0x48] sm:$0xff]
    %v123 = vld [vmem:[#allocation2 + $0x50] sm:$0xff]
    %v124 = vld [vmem:[#allocation2 + $0x58] sm:$0xff]
    %v125 = vld [vmem:[#allocation2 + $0x60] sm:$0xff]
    %v126 = vld [vmem:[#allocation2 + $0x68] sm:$0xff]
    %v127 = vld [vmem:[#allocation2 + $0x70] sm:$0xff]
    %v128 = vld [vmem:[#allocation2 + $0x78] sm:$0xff]
    %v129 = vld [vmem:[#allocation2 + $0x80] sm:$0xff]
    %v130 = vld [vmem:[#allocation2 + $0x88] sm:$0xff]
    %v131 = vld [vmem:[#allocation2 + $0x90] sm:$0xff]
    %v132 = vld [vmem:[#allocation2 + $0x98] sm:$0xff]
    %v133 = vld [vmem:[#allocation2 + $0xa0] sm:$0xff]
    %v134 = vld [vmem:[#allocation2 + $0xa8] sm:$0xff]
    %v135 = vld [vmem:[#allocation2 + $0xb0] sm:$0xff]
    %v136 = vld [vmem:[#allocation2 + $0xb8] sm:$0xff]
    %v137 = vld [vmem:[#allocation2 + $0xc0] sm:$0xff]
    %v138 = vld [vmem:[#allocation2 + $0xc8] sm:$0xff]
    %v139 = vld [vmem:[#allocation2 + $0xd0] sm:$0xff]
    %v140 = vld [vmem:[#allocation2 + $0xd8] sm:$0xff]
    %v141 = vld [vmem:[#allocation2 + $0xe0] sm:$0xff]
    %v142 = vld [vmem:[#allocation2 + $0xe8] sm:$0xff]
    %v143 = vld [vmem:[#allocation2 + $0xf0] sm:$0xff]
    %v144 = vld [vmem:[#allocation2 + $0xf8] sm:$0xff]
    %v145 = vld [vmem:[#allocation2 + $0x100] sm:$0xff]
    %v146 = vld [vmem:[#allocation2 + $0x108] sm:$0xff]
    %v147 = vld [vmem:[#allocation2 + $0x110] sm:$0xff]
    %v148 = vld [vmem:[#allocation2 + $0x118] sm:$0xff]
    %v149 = vld [vmem:[#allocation2 + $0x120] sm:$0xff]
    %v150 = vld [vmem:[#allocation2 + $0x128] sm:$0xff]
    %v151 = vld [vmem:[#allocation2 + $0x130] sm:$0xff]
    %v152 = vld [vmem:[#allocation2 + $0x138] sm:$0xff]
    %v153 = vld [vmem:[#allocation2 + $0x140] sm:$0xff]
    %v154 = vld [vmem:[#allocation2 + $0x148] sm:$0xff]
    %v155 = vld [vmem:[#allocation2 + $0x150] sm:$0xff]
    %v156 = vld [vmem:[#allocation2 + $0x158] sm:$0xff]
    %v157 = vld [vmem:[#allocation2 + $0x160] sm:$0xff]
    %v158 = vld [vmem:[#allocation2 + $0x168] sm:$0xff]
    %v159 = vld [vmem:[#allocation2 + $0x170] sm:$0xff]
    %v160 = vld [vmem:[#allocation2 + $0x178] sm:$0xff]
    %v161 = vld [vmem:[#allocation2 + $0x180] sm:$0xff]
    %v162 = vld [vmem:[#allocation2 + $0x188] sm:$0xff]
    %v163 = vld [vmem:[#allocation2 + $0x190] sm:$0xff]
    %v164 = vld [vmem:[#allocation2 + $0x198] sm:$0xff]
    %v165 = vld [vmem:[#allocation2 + $0x1a0] sm:$0xff]
    %v166 = vld [vmem:[#allocation2 + $0x1a8] sm:$0xff]
    %v167 = vld [vmem:[#allocation2 + $0x1b0] sm:$0xff]
    %v168 = vld [vmem:[#allocation2 + $0x1b8] sm:$0xff]
    %v169 = vld [vmem:[#allocation2 + $0x1c0] sm:$0xff]
    %v170 = vld [vmem:[#allocation2 + $0x1c8] sm:$0xff]
    %v171 = vld [vmem:[#allocation2 + $0x1d0] sm:$0xff]
    %v172 = vld [vmem:[#allocation2 + $0x1d8] sm:$0xff]
    %v173 = vld [vmem:[#allocation2 + $0x1e0] sm:$0xff]
    %v174 = vld [vmem:[#allocation2 + $0x1e8] sm:$0xff]
    %v175 = vld [vmem:[#allocation2 + $0x1f0] sm:$0xff]
    %v176 = vld [vmem:[#allocation2 + $0x1f8] sm:$0xff]
    %v177 = vld [vmem:[#allocation3] sm:$0xf]
    %v178 = vld [vmem:[#allocation3 + $0x4] sm:$0xf]
    %v179 = vld [vmem:[#allocation3 + $0x8] sm:$0xf]
    %v180 = vld [vmem:[#allocation3 + $0xc] sm:$0xf]
    %v181 = vld [vmem:[#allocation3 + $0x10] sm:$0xf]
    %v182 = vld [vmem:[#allocation3 + $0x14] sm:$0xf]
    %v183 = vld [vmem:[#allocation3 + $0x18] sm:$0xf]
    %v184 = vld [vmem:[#allocation3 + $0x1c] sm:$0xf]
    %v185 = vld [vmem:[#allocation3 + $0x20] sm:$0xf]
    %v186 = vld [vmem:[#allocation3 + $0x24] sm:$0xf]
    %v187 = vld [vmem:[#allocation3 + $0x28] sm:$0xf]
    %v188 = vld [vmem:[#allocation3 + $0x2c] sm:$0xf]
    %v189 = vld [vmem:[#allocation3 + $0x30] sm:$0xf]
    %v190 = vld [vmem:[#allocation3 + $0x34] sm:$0xf]
    %v191 = vld [vmem:[#allocation3 + $0x38] sm:$0xf]
    %v192 = vld [vmem:[#allocation3 + $0x3c] sm:$0xf]
    %v193 = vld [vmem:[#allocation3 + $0x40] sm:$0xf]
    %v194 = vld [vmem:[#allocation3 + $0x44] sm:$0xf]
    %v195 = vld [vmem:[#allocation3 + $0x48] sm:$0xf]
    %v196 = vld [vmem:[#allocation3 + $0x4c] sm:$0xf]
    %v197 = vld [vmem:[#allocation3 + $0x50] sm:$0xf]
    %v198 = vld [vmem:[#allocation3 + $0x54] sm:$0xf]
    %v199 = vld [vmem:[#allocation3 + $0x58] sm:$0xf]
    %v200 = vld [vmem:[#allocation3 + $0x5c] sm:$0xf]
    %v201 = vld [vmem:[#allocation3 + $0x60] sm:$0xf]
    %v202 = vld [vmem:[#allocation3 + $0x64] sm:$0xf]
    %v203 = vld [vmem:[#allocation3 + $0x68] sm:$0xf]
    %v204 = vld [vmem:[#allocation3 + $0x6c] sm:$0xf]
    %v205 = vld [vmem:[#allocation3 + $0x70] sm:$0xf]
    %v206 = vld [vmem:[#allocation3 + $0x74] sm:$0xf]
    %v207 = vld [vmem:[#allocation3 + $0x78] sm:$0xf]
    %v208 = vld [vmem:[#allocation3 + $0x7c] sm:$0xf]
    %v209 = vld [vmem:[#allocation3 + $0x80] sm:$0xf]
    %v210 = vld [vmem:[#allocation3 + $0x84] sm:$0xf]
    %v211 = vld [vmem:[#allocation3 + $0x88] sm:$0xf]
    %v212 = vld [vmem:[#allocation3 + $0x8c] sm:$0xf]
    %v213 = vld [vmem:[#allocation3 + $0x90] sm:$0xf]
    %v214 = vld [vmem:[#allocation3 + $0x94] sm:$0xf]
    %v215 = vld [vmem:[#allocation3 + $0x98] sm:$0xf]
    %v216 = vld [vmem:[#allocation3 + $0x9c] sm:$0xf]
    %v217 = vld [vmem:[#allocation3 + $0xa0] sm:$0xf]
    %v218 = vld [vmem:[#allocation3 + $0xa4] sm:$0xf]
    %v219 = vld [vmem:[#allocation3 + $0xa8] sm:$0xf]
    %v220 = vld [vmem:[#allocation3 + $0xac] sm:$0xf]
    %v221 = vld [vmem:[#allocation3 + $0xb0] sm:$0xf]
    %v222 = vld [vmem:[#allocation3 + $0xb4] sm:$0xf]
    %v223 = vld [vmem:[#allocation3 + $0xb8] sm:$0xf]
    %v224 = vld [vmem:[#allocation3 + $0xbc] sm:$0xf]
    %v225 = vld [vmem:[#allocation3 + $0xc0] sm:$0xf]
    %v226 = vld [vmem:[#allocation3 + $0xc4] sm:$0xf]
    %v227 = vld [vmem:[#allocation3 + $0xc8] sm:$0xf]
    %v228 = vld [vmem:[#allocation3 + $0xcc] sm:$0xf]
    %v229 = vld [vmem:[#allocation3 + $0xd0] sm:$0xf]
    %v230 = vld [vmem:[#allocation3 + $0xd4] sm:$0xf]
    %v231 = vld [vmem:[#allocation3 + $0xd8] sm:$0xf]
    %v232 = vld [vmem:[#allocation3 + $0xdc] sm:$0xf]
    %v233 = vld [vmem:[#allocation3 + $0xe0] sm:$0xf]
    %v234 = vld [vmem:[#allocation3 + $0xe4] sm:$0xf]
    %v235 = vld [vmem:[#allocation3 + $0xe8] sm:$0xf]
    %v236 = vld [vmem:[#allocation3 + $0xec] sm:$0xf]
    %v237 = vld [vmem:[#allocation3 + $0xf0] sm:$0xf]
    %v238 = vld [vmem:[#allocation3 + $0xf4] sm:$0xf]
    %v239 = vld [vmem:[#allocation3 + $0xf8] sm:$0xf]
    %v240 = vld [vmem:[#allocation3 + $0xfc] sm:$0xf]
    %v241 = vld [vmem:[#allocation6] sm:$0xf]
    %v242 = vld [vmem:[#allocation6 + $0x4] sm:$0xf]
    %v243 = vld [vmem:[#allocation6 + $0x8] sm:$0xf]
    %v244 = vld [vmem:[#allocation6 + $0xc] sm:$0xf]
    %v245 = vld [vmem:[#allocation6 + $0x10] sm:$0xf]
    %v246 = vld [vmem:[#allocation6 + $0x14] sm:$0xf]
    %v247 = vld [vmem:[#allocation6 + $0x18] sm:$0xf]
    %v248 = vld [vmem:[#allocation6 + $0x1c] sm:$0xf]
    %v249 = vld [vmem:[#allocation6 + $0x20] sm:$0xf]
    %v250 = vld [vmem:[#allocation6 + $0x24] sm:$0xf]
    %v251 = vld [vmem:[#allocation6 + $0x28] sm:$0xf]
    %v252 = vld [vmem:[#allocation6 + $0x2c] sm:$0xf]
    %v253 = vld [vmem:[#allocation6 + $0x30] sm:$0xf]
    %v254 = vld [vmem:[#allocation6 + $0x34] sm:$0xf]
    %v255 = vld [vmem:[#allocation6 + $0x38] sm:$0xf]
    %v256 = vld [vmem:[#allocation6 + $0x3c] sm:$0xf]
    %v321 = vunpack.c.l.b16 %v177
    %v322 = vunpack.c.l.b16 %v178
    %v323 = vunpack.c.l.b16 %v179
    %v324 = vunpack.c.l.b16 %v180
    %v325 = vunpack.c.l.b16 %v181
    %v326 = vunpack.c.l.b16 %v182
    %v327 = vunpack.c.l.b16 %v183
    %v328 = vunpack.c.l.b16 %v184
    %v329 = vunpack.c.l.b16 %v185
    %v330 = vunpack.c.l.b16 %v186
    %v331 = vunpack.c.l.b16 %v187
    %v332 = vunpack.c.l.b16 %v188
    %v333 = vunpack.c.l.b16 %v189
    %v334 = vunpack.c.l.b16 %v190
    %v335 = vunpack.c.l.b16 %v191
    %v336 = vunpack.c.l.b16 %v192
    %v337 = vunpack.c.l.b16 %v193
    %v338 = vunpack.c.l.b16 %v194
    %v339 = vunpack.c.l.b16 %v195
    %v340 = vunpack.c.l.b16 %v196
    %v341 = vunpack.c.l.b16 %v197
    %v342 = vunpack.c.l.b16 %v198
    %v343 = vunpack.c.l.b16 %v199
    %v344 = vunpack.c.l.b16 %v200
    %v345 = vunpack.c.l.b16 %v201
    %v346 = vunpack.c.l.b16 %v202
    %v347 = vunpack.c.l.b16 %v203
    %v348 = vunpack.c.l.b16 %v204
    %v349 = vunpack.c.l.b16 %v205
    %v350 = vunpack.c.l.b16 %v206
    %v351 = vunpack.c.l.b16 %v207
    %v352 = vunpack.c.l.b16 %v208
    %v353 = vunpack.c.l.b16 %v209
    %v354 = vunpack.c.l.b16 %v210
    %v355 = vunpack.c.l.b16 %v211
    %v356 = vunpack.c.l.b16 %v212
    %v357 = vunpack.c.l.b16 %v213
    %v358 = vunpack.c.l.b16 %v214
    %v359 = vunpack.c.l.b16 %v215
    %v360 = vunpack.c.l.b16 %v216
    %v361 = vunpack.c.l.b16 %v217
    %v362 = vunpack.c.l.b16 %v218
    %v363 = vunpack.c.l.b16 %v219
    %v364 = vunpack.c.l.b16 %v220
    %v365 = vunpack.c.l.b16 %v221
    %v366 = vunpack.c.l.b16 %v222
    %v367 = vunpack.c.l.b16 %v223
    %v368 = vunpack.c.l.b16 %v224
    %v369 = vunpack.c.l.b16 %v225
    %v370 = vunpack.c.l.b16 %v226
    %v371 = vunpack.c.l.b16 %v227
    %v372 = vunpack.c.l.b16 %v228
    %v373 = vunpack.c.l.b16 %v229
    %v374 = vunpack.c.l.b16 %v230
    %v375 = vunpack.c.l.b16 %v231
    %v376 = vunpack.c.l.b16 %v232
    %v377 = vunpack.c.l.b16 %v233
    %v378 = vunpack.c.l.b16 %v234
    %v379 = vunpack.c.l.b16 %v235
    %v380 = vunpack.c.l.b16 %v236
    %v381 = vunpack.c.l.b16 %v237
    %v382 = vunpack.c.l.b16 %v238
    %v383 = vunpack.c.l.b16 %v239
    %v384 = vunpack.c.l.b16 %v240
    %v385 = vpack.c.b16 %v322, %v321
    %v386 = vpack.c.b16 %v324, %v323
    %v387 = vpack.c.b16 %v326, %v325
    %v388 = vpack.c.b16 %v328, %v327
    %v389 = vpack.c.b16 %v330, %v329
    %v390 = vpack.c.b16 %v332, %v331
    %v391 = vpack.c.b16 %v334, %v333
    %v392 = vpack.c.b16 %v336, %v335
    %v393 = vpack.c.b16 %v338, %v337
    %v394 = vpack.c.b16 %v340, %v339
    %v395 = vpack.c.b16 %v342, %v341
    %v396 = vpack.c.b16 %v344, %v343
    %v397 = vpack.c.b16 %v346, %v345
    %v398 = vpack.c.b16 %v348, %v347
    %v399 = vpack.c.b16 %v350, %v349
    %v400 = vpack.c.b16 %v352, %v351
    %v401 = vpack.c.b16 %v354, %v353
    %v402 = vpack.c.b16 %v356, %v355
    %v403 = vpack.c.b16 %v358, %v357
    %v404 = vpack.c.b16 %v360, %v359
    %v405 = vpack.c.b16 %v362, %v361
    %v406 = vpack.c.b16 %v364, %v363
    %v407 = vpack.c.b16 %v366, %v365
    %v408 = vpack.c.b16 %v368, %v367
    %v409 = vpack.c.b16 %v370, %v369
    %v410 = vpack.c.b16 %v372, %v371
    %v411 = vpack.c.b16 %v374, %v373
    %v412 = vpack.c.b16 %v376, %v375
    %v413 = vpack.c.b16 %v378, %v377
    %v414 = vpack.c.b16 %v380, %v379
    %v415 = vpack.c.b16 %v382, %v381
    %v416 = vpack.c.b16 %v384, %v383
    %v465 = vunpack.c.l.b16 %v241
    %v466 = vunpack.c.l.b16 %v242
    %v467 = vunpack.c.l.b16 %v243
    %v468 = vunpack.c.l.b16 %v244
    %v469 = vunpack.c.l.b16 %v245
    %v470 = vunpack.c.l.b16 %v246
    %v471 = vunpack.c.l.b16 %v247
    %v472 = vunpack.c.l.b16 %v248
    %v473 = vunpack.c.l.b16 %v249
    %v474 = vunpack.c.l.b16 %v250
    %v475 = vunpack.c.l.b16 %v251
    %v476 = vunpack.c.l.b16 %v252
    %v477 = vunpack.c.l.b16 %v253
    %v478 = vunpack.c.l.b16 %v254
    %v479 = vunpack.c.l.b16 %v255
    %v480 = vunpack.c.l.b16 %v256
    %v481 = vpack.c.b16 %v466, %v465
    %v482 = vpack.c.b16 %v468, %v467
    %v483 = vpack.c.b16 %v470, %v469
    %v484 = vpack.c.b16 %v472, %v471
    %v485 = vpack.c.b16 %v474, %v473
    %v486 = vpack.c.b16 %v476, %v475
    %v487 = vpack.c.b16 %v478, %v477
    %v488 = vpack.c.b16 %v480, %v479
    %497 = vmatprep.subr.bf16.mxu0 0
    %498 = vmatpush1.bf16.msra.mxu0 %v481
    %499 = vmatprep.subr.bf16.mxu0 0
    %500 = vmatpush1.bf16.msra.mxu0 %v482
    %501 = vmatprep.subr.bf16.mxu0 0
    %502 = vmatpush1.bf16.msra.mxu0 %v483
    %503 = vmatprep.subr.bf16.mxu0 0
    %504 = vmatpush1.bf16.msra.mxu0 %v484
    %505 = vmatprep.subr.bf16.mxu0 0
    %506 = vmatpush1.bf16.msra.mxu0 %v485
    %507 = vmatprep.subr.bf16.mxu0 0
    %508 = vmatpush1.bf16.msra.mxu0 %v486
    %509 = vmatprep.subr.bf16.mxu0 0
    %510 = vmatpush1.bf16.msra.mxu0 %v487
    %511 = vmatprep.subr.bf16.mxu0 0
    %512 = vmatpush1.bf16.msra.mxu0 %v488
    %513 = vmatprep.subr.bf16.mxu0 0
    %514 = vmatpush1.bf16.msra.mxu0 0
    %515 = vmatprep.subr.bf16.mxu0 0
    %516 = vmatpush1.bf16.msra.mxu0 0
    %517 = vmatprep.subr.bf16.mxu0 0
    %518 = vmatpush1.bf16.msra.mxu0 0
    %519 = vmatprep.subr.bf16.mxu0 0
    %520 = vmatpush1.bf16.msra.mxu0 0
    %521 = vmatprep.subr.bf16.mxu0 0
    %522 = vmatpush1.bf16.msra.mxu0 0
    %523 = vmatprep.subr.bf16.mxu0 0
    %524 = vmatpush1.bf16.msra.mxu0 0
    %525 = vmatprep.subr.bf16.mxu0 0
    %526 = vmatpush1.bf16.msra.mxu0 0
    %527 = vmatprep.subr.bf16.mxu0 0
    %528 = vmatpush1.bf16.msra.mxu0 0
    %529 = vmatprep.mubr.bf16.mxu0 0
    %530 = vmatmul.mubr.bf16.gmra.mrb[0].mxu0 %v385
    %v531 = vpop.f32.mrb[0].mxu0
    %v532 = vadd.f32 0.0, %v531
    %v533 = vpop.f32.mrb[0].mxu0
    %v534 = vpop.f32.mrb[0].mxu0
    %v535 = vadd.f32 0.0, %v534
    %v536 = vpop.f32.mrb[0].mxu0
    %537 = vmatprep.mubr.bf16.mxu0 0
    %538 = vmatmul.mubr.bf16.gmra.mrb[0].mxu0 %v386
    %v539 = vpop.f32.mrb[0].mxu0
    %v540 = vadd.f32 0.0, %v539
    %v541 = vpop.f32.mrb[0].mxu0
    %v542 = vpop.f32.mrb[0].mxu0
    %v543 = vadd.f32 0.0, %v542
    %v544 = vpop.f32.mrb[0].mxu0
    %545 = vmatprep.mubr.bf16.mxu0 0
    %546 = vmatmul.mubr.bf16.gmra.mrb[0].mxu0 %v387
    %v547 = vpop.f32.mrb[0].mxu0
    %v548 = vadd.f32 0.0, %v547
    %v549 = vpop.f32.mrb[0].mxu0
    %v550 = vpop.f32.mrb[0].mxu0
    %v551 = vadd.f32 0.0, %v550
    %v552 = vpop.f32.mrb[0].mxu0
    %553 = vmatprep.mubr.bf16.mxu0 0
    %554 = vmatmul.mubr.bf16.gmra.mrb[0].mxu0 %v388
    %v555 = vpop.f32.mrb[0].mxu0
    %v556 = vadd.f32 0.0, %v555
    %v557 = vpop.f32.mrb[0].mxu0
    %v558 = vpop.f32.mrb[0].mxu0
    %v559 = vadd.f32 0.0, %v558
    %v560 = vpop.f32.mrb[0].mxu0
    %561 = vmatprep.mubr.bf16.mxu0 0
    %562 = vmatmul.mubr.bf16.gmra.mrb[0].mxu0 %v389
    %v563 = vpop.f32.mrb[0].mxu0
    %v564 = vadd.f32 0.0, %v563
    %v565 = vpop.f32.mrb[0].mxu0
    %v566 = vpop.f32.mrb[0].mxu0
    %v567 = vadd.f32 0.0, %v566
    %v568 = vpop.f32.mrb[0].mxu0
    %569 = vmatprep.mubr.bf16.mxu0 0
    %570 = vmatmul.mubr.bf16.gmra.mrb[0].mxu0 %v390
    %v571 = vpop.f32.mrb[0].mxu0
    %v572 = vadd.f32 0.0, %v571
    %v573 = vpop.f32.mrb[0].mxu0
    %v574 = vpop.f32.mrb[0].mxu0
    %v575 = vadd.f32 0.0, %v574
    %v576 = vpop.f32.mrb[0].mxu0
    %577 = vmatprep.mubr.bf16.mxu0 0
    %578 = vmatmul.mubr.bf16.gmra.mrb[0].mxu0 %v391
    %v579 = vpop.f32.mrb[0].mxu0
    %v580 = vadd.f32 0.0, %v579
    %v581 = vpop.f32.mrb[0].mxu0
    %v582 = vpop.f32.mrb[0].mxu0
    %v583 = vadd.f32 0.0, %v582
    %v584 = vpop.f32.mrb[0].mxu0
    %585 = vmatprep.mubr.bf16.mxu0 0
    %586 = vmatmul.mubr.bf16.gmra.mrb[0].mxu0 %v392
    %v587 = vpop.f32.mrb[0].mxu0
    %v588 = vadd.f32 0.0, %v587
    %v589 = vpop.f32.mrb[0].mxu0
    %v590 = vpop.f32.mrb[0].mxu0
    %v591 = vadd.f32 0.0, %v590
    %v592 = vpop.f32.mrb[0].mxu0
    %593 = vmatprep.mubr.bf16.mxu0 0
    %594 = vmatmul.mubr.bf16.gmra.mrb[0].mxu0 %v393
    %v595 = vpop.f32.mrb[0].mxu0
    %v596 = vadd.f32 0.0, %v595
    %v597 = vpop.f32.mrb[0].mxu0
    %v598 = vpop.f32.mrb[0].mxu0
    %v599 = vadd.f32 0.0, %v598
    %v600 = vpop.f32.mrb[0].mxu0
    %601 = vmatprep.mubr.bf16.mxu0 0
    %602 = vmatmul.mubr.bf16.gmra.mrb[0].mxu0 %v394
    %v603 = vpop.f32.mrb[0].mxu0
    %v604 = vadd.f32 0.0, %v603
    %v605 = vpop.f32.mrb[0].mxu0
    %v606 = vpop.f32.mrb[0].mxu0
    %v607 = vadd.f32 0.0, %v606
    %v608 = vpop.f32.mrb[0].mxu0
    %609 = vmatprep.mubr.bf16.mxu0 0
    %610 = vmatmul.mubr.bf16.gmra.mrb[0].mxu0 %v395
    %v611 = vpop.f32.mrb[0].mxu0
    %v612 = vadd.f32 0.0, %v611
    %v613 = vpop.f32.mrb[0].mxu0
    %v614 = vpop.f32.mrb[0].mxu0
    %v615 = vadd.f32 0.0, %v614
    %v616 = vpop.f32.mrb[0].mxu0
    %617 = vmatprep.mubr.bf16.mxu0 0
    %618 = vmatmul.mubr.bf16.gmra.mrb[0].mxu0 %v396
    %v619 = vpop.f32.mrb[0].mxu0
    %v620 = vadd.f32 0.0, %v619
    %v621 = vpop.f32.mrb[0].mxu0
    %v622 = vpop.f32.mrb[0].mxu0
    %v623 = vadd.f32 0.0, %v622
    %v624 = vpop.f32.mrb[0].mxu0
    %625 = vmatprep.mubr.bf16.mxu0 0
    %626 = vmatmul.mubr.bf16.gmra.mrb[0].mxu0 %v397
    %v627 = vpop.f32.mrb[0].mxu0
    %v628 = vadd.f32 0.0, %v627
    %v629 = vpop.f32.mrb[0].mxu0
    %v630 = vpop.f32.mrb[0].mxu0
    %v631 = vadd.f32 0.0, %v630
    %v632 = vpop.f32.mrb[0].mxu0
    %633 = vmatprep.mubr.bf16.mxu0 0
    %634 = vmatmul.mubr.bf16.gmra.mrb[0].mxu0 %v398
    %v635 = vpop.f32.mrb[0].mxu0
    %v636 = vadd.f32 0.0, %v635
    %v637 = vpop.f32.mrb[0].mxu0
    %v638 = vpop.f32.mrb[0].mxu0
    %v639 = vadd.f32 0.0, %v638
    %v640 = vpop.f32.mrb[0].mxu0
    %641 = vmatprep.mubr.bf16.mxu0 0
    %642 = vmatmul.mubr.bf16.gmra.mrb[0].mxu0 %v399
    %v643 = vpop.f32.mrb[0].mxu0
    %v644 = vadd.f32 0.0, %v643
    %v645 = vpop.f32.mrb[0].mxu0
    %v646 = vpop.f32.mrb[0].mxu0
    %v647 = vadd.f32 0.0, %v646
    %v648 = vpop.f32.mrb[0].mxu0
    %649 = vmatprep.mubr.bf16.mxu0 0
    %650 = vmatmul.mubr.bf16.gmra.mrb[0].mxu0 %v400
    %v651 = vpop.f32.mrb[0].mxu0
    %v652 = vadd.f32 0.0, %v651
    %v653 = vpop.f32.mrb[0].mxu0
    %v654 = vpop.f32.mrb[0].mxu0
    %v655 = vadd.f32 0.0, %v654
    %v656 = vpop.f32.mrb[0].mxu0
    %657 = vmatprep.mubr.bf16.mxu0 0
    %658 = vmatmul.mubr.bf16.gmra.mrb[0].mxu0 %v401
    %v659 = vpop.f32.mrb[0].mxu0
    %v660 = vadd.f32 0.0, %v659
    %v661 = vpop.f32.mrb[0].mxu0
    %v662 = vpop.f32.mrb[0].mxu0
    %v663 = vadd.f32 0.0, %v662
    %v664 = vpop.f32.mrb[0].mxu0
    %665 = vmatprep.mubr.bf16.mxu0 0
    %666 = vmatmul.mubr.bf16.gmra.mrb[0].mxu0 %v402
    %v667 = vpop.f32.mrb[0].mxu0
    %v668 = vadd.f32 0.0, %v667
    %v669 = vpop.f32.mrb[0].mxu0
    %v670 = vpop.f32.mrb[0].mxu0
    %v671 = vadd.f32 0.0, %v670
    %v672 = vpop.f32.mrb[0].mxu0
    %673 = vmatprep.mubr.bf16.mxu0 0
    %674 = vmatmul.mubr.bf16.gmra.mrb[0].mxu0 %v403
    %v675 = vpop.f32.mrb[0].mxu0
    %v676 = vadd.f32 0.0, %v675
    %v677 = vpop.f32.mrb[0].mxu0
    %v678 = vpop.f32.mrb[0].mxu0
    %v679 = vadd.f32 0.0, %v678
    %v680 = vpop.f32.mrb[0].mxu0
    %681 = vmatprep.mubr.bf16.mxu0 0
    %682 = vmatmul.mubr.bf16.gmra.mrb[0].mxu0 %v404
    %v683 = vpop.f32.mrb[0].mxu0
    %v684 = vadd.f32 0.0, %v683
    %v685 = vpop.f32.mrb[0].mxu0
    %v686 = vpop.f32.mrb[0].mxu0
    %v687 = vadd.f32 0.0, %v686
    %v688 = vpop.f32.mrb[0].mxu0
    %689 = vmatprep.mubr.bf16.mxu0 0
    %690 = vmatmul.mubr.bf16.gmra.mrb[0].mxu0 %v405
    %v691 = vpop.f32.mrb[0].mxu0
    %v692 = vadd.f32 0.0, %v691
    %v693 = vpop.f32.mrb[0].mxu0
    %v694 = vpop.f32.mrb[0].mxu0
    %v695 = vadd.f32 0.0, %v694
    %v696 = vpop.f32.mrb[0].mxu0
    %697 = vmatprep.mubr.bf16.mxu0 0
    %698 = vmatmul.mubr.bf16.gmra.mrb[0].mxu0 %v406
    %v699 = vpop.f32.mrb[0].mxu0
    %v700 = vadd.f32 0.0, %v699
    %v701 = vpop.f32.mrb[0].mxu0
    %v702 = vpop.f32.mrb[0].mxu0
    %v703 = vadd.f32 0.0, %v702
    %v704 = vpop.f32.mrb[0].mxu0
    %705 = vmatprep.mubr.bf16.mxu0 0
    %706 = vmatmul.mubr.bf16.gmra.mrb[0].mxu0 %v407
    %v707 = vpop.f32.mrb[0].mxu0
    %v708 = vadd.f32 0.0, %v707
    %v709 = vpop.f32.mrb[0].mxu0
    %v710 = vpop.f32.mrb[0].mxu0
    %v711 = vadd.f32 0.0, %v710
    %v712 = vpop.f32.mrb[0].mxu0
    %713 = vmatprep.mubr.bf16.mxu0 0
    %714 = vmatmul.mubr.bf16.gmra.mrb[0].mxu0 %v408
    %v715 = vpop.f32.mrb[0].mxu0
    %v716 = vadd.f32 0.0, %v715
    %v717 = vpop.f32.mrb[0].mxu0
    %v718 = vpop.f32.mrb[0].mxu0
    %v719 = vadd.f32 0.0, %v718
    %v720 = vpop.f32.mrb[0].mxu0
    %721 = vmatprep.mubr.bf16.mxu0 0
    %722 = vmatmul.mubr.bf16.gmra.mrb[0].mxu0 %v409
    %v723 = vpop.f32.mrb[0].mxu0
    %v724 = vadd.f32 0.0, %v723
    %v725 = vpop.f32.mrb[0].mxu0
    %v726 = vpop.f32.mrb[0].mxu0
    %v727 = vadd.f32 0.0, %v726
    %v728 = vpop.f32.mrb[0].mxu0
    %729 = vmatprep.mubr.bf16.mxu0 0
    %730 = vmatmul.mubr.bf16.gmra.mrb[0].mxu0 %v410
    %v731 = vpop.f32.mrb[0].mxu0
    %v732 = vadd.f32 0.0, %v731
    %v733 = vpop.f32.mrb[0].mxu0
    %v734 = vpop.f32.mrb[0].mxu0
    %v735 = vadd.f32 0.0, %v734
    %v736 = vpop.f32.mrb[0].mxu0
    %737 = vmatprep.mubr.bf16.mxu0 0
    %738 = vmatmul.mubr.bf16.gmra.mrb[0].mxu0 %v411
    %v739 = vpop.f32.mrb[0].mxu0
    %v740 = vadd.f32 0.0, %v739
    %v741 = vpop.f32.mrb[0].mxu0
    %v742 = vpop.f32.mrb[0].mxu0
    %v743 = vadd.f32 0.0, %v742
    %v744 = vpop.f32.mrb[0].mxu0
    %745 = vmatprep.mubr.bf16.mxu0 0
    %746 = vmatmul.mubr.bf16.gmra.mrb[0].mxu0 %v412
    %v747 = vpop.f32.mrb[0].mxu0
    %v748 = vadd.f32 0.0, %v747
    %v749 = vpop.f32.mrb[0].mxu0
    %v750 = vpop.f32.mrb[0].mxu0
    %v751 = vadd.f32 0.0, %v750
    %v752 = vpop.f32.mrb[0].mxu0
    %753 = vmatprep.mubr.bf16.mxu0 0
    %754 = vmatmul.mubr.bf16.gmra.mrb[0].mxu0 %v413
    %v755 = vpop.f32.mrb[0].mxu0
    %v756 = vadd.f32 0.0, %v755
    %v757 = vpop.f32.mrb[0].mxu0
    %v758 = vpop.f32.mrb[0].mxu0
    %v759 = vadd.f32 0.0, %v758
    %v760 = vpop.f32.mrb[0].mxu0
    %761 = vmatprep.mubr.bf16.mxu0 0
    %762 = vmatmul.mubr.bf16.gmra.mrb[0].mxu0 %v414
    %v763 = vpop.f32.mrb[0].mxu0
    %v764 = vadd.f32 0.0, %v763
    %v765 = vpop.f32.mrb[0].mxu0
    %v766 = vpop.f32.mrb[0].mxu0
    %v767 = vadd.f32 0.0, %v766
    %v768 = vpop.f32.mrb[0].mxu0
    %769 = vmatprep.mubr.bf16.mxu0 0
    %770 = vmatmul.mubr.bf16.gmra.mrb[0].mxu0 %v415
    %v771 = vpop.f32.mrb[0].mxu0
    %v772 = vadd.f32 0.0, %v771
    %v773 = vpop.f32.mrb[0].mxu0
    %v774 = vpop.f32.mrb[0].mxu0
    %v775 = vadd.f32 0.0, %v774
    %v776 = vpop.f32.mrb[0].mxu0
    %777 = vmatprep.mubr.bf16.mxu0 0
    %778 = vmatmul.mubr.bf16.gmra.mrb[0].mxu0 %v416
    %v779 = vpop.f32.mrb[0].mxu0
    %v780 = vadd.f32 0.0, %v779
    %v781 = vpop.f32.mrb[0].mxu0
    %v782 = vpop.f32.mrb[0].mxu0
    %v783 = vadd.f32 0.0, %v782
    %v784 = vpop.f32.mrb[0].mxu0
    %785 = vdwg.mxu0
    %v786 = vadd.f32 %v113, %v532
    %v787 = vadd.f32 %v114, %v535
    %v788 = vadd.f32 %v115, %v540
    %v789 = vadd.f32 %v116, %v543
    %v790 = vadd.f32 %v117, %v548
    %v791 = vadd.f32 %v118, %v551
    %v792 = vadd.f32 %v119, %v556
    %v793 = vadd.f32 %v120, %v559
    %v794 = vadd.f32 %v121, %v564
    %v795 = vadd.f32 %v122, %v567
    %v796 = vadd.f32 %v123, %v572
    %v797 = vadd.f32 %v124, %v575
    %v798 = vadd.f32 %v125, %v580
    %v799 = vadd.f32 %v126, %v583
    %v800 = vadd.f32 %v127, %v588
    %v801 = vadd.f32 %v128, %v591
    %v802 = vadd.f32 %v129, %v596
    %v803 = vadd.f32 %v130, %v599
    %v804 = vadd.f32 %v131, %v604
    %v805 = vadd.f32 %v132, %v607
    %v806 = vadd.f32 %v133, %v612
    %v807 = vadd.f32 %v134, %v615
    %v808 = vadd.f32 %v135, %v620
    %v809 = vadd.f32 %v136, %v623
    %v810 = vadd.f32 %v137, %v628
    %v811 = vadd.f32 %v138, %v631
    %v812 = vadd.f32 %v139, %v636
    %v813 = vadd.f32 %v140, %v639
    %v814 = vadd.f32 %v141, %v644
    %v815 = vadd.f32 %v142, %v647
    %v816 = vadd.f32 %v143, %v652
    %v817 = vadd.f32 %v144, %v655
    %v818 = vadd.f32 %v145, %v660
    %v819 = vadd.f32 %v146, %v663
    %v820 = vadd.f32 %v147, %v668
    %v821 = vadd.f32 %v148, %v671
    %v822 = vadd.f32 %v149, %v676
    %v823 = vadd.f32 %v150, %v679
    %v824 = vadd.f32 %v151, %v684
    %v825 = vadd.f32 %v152, %v687
    %v826 = vadd.f32 %v153, %v692
    %v827 = vadd.f32 %v154, %v695
    %v828 = vadd.f32 %v155, %v700
    %v829 = vadd.f32 %v156, %v703
    %v830 = vadd.f32 %v157, %v708
    %v831 = vadd.f32 %v158, %v711
    %v832 = vadd.f32 %v159, %v716
    %v833 = vadd.f32 %v160, %v719
    %v834 = vadd.f32 %v161, %v724
    %v835 = vadd.f32 %v162, %v727
    %v836 = vadd.f32 %v163, %v732
    %v837 = vadd.f32 %v164, %v735
    %v838 = vadd.f32 %v165, %v740
    %v839 = vadd.f32 %v166, %v743
    %v840 = vadd.f32 %v167, %v748
    %v841 = vadd.f32 %v168, %v751
    %v842 = vadd.f32 %v169, %v756
    %v843 = vadd.f32 %v170, %v759
    %v844 = vadd.f32 %v171, %v764
    %v845 = vadd.f32 %v172, %v767
    %v846 = vadd.f32 %v173, %v772
    %v847 = vadd.f32 %v174, %v775
    %v848 = vadd.f32 %v175, %v780
    %v849 = vadd.f32 %v176, %v783
    %850 = vst [vmem:[#allocation2] sm:$0xff] %v786
    %851 = vst [vmem:[#allocation2 + $0x8] sm:$0xff] %v787
    %852 = vst [vmem:[#allocation2 + $0x10] sm:$0xff] %v788
    %853 = vst [vmem:[#allocation2 + $0x18] sm:$0xff] %v789
    %854 = vst [vmem:[#allocation2 + $0x20] sm:$0xff] %v790
    %855 = vst [vmem:[#allocation2 + $0x28] sm:$0xff] %v791
    %856 = vst [vmem:[#allocation2 + $0x30] sm:$0xff] %v792
    %857 = vst [vmem:[#allocation2 + $0x38] sm:$0xff] %v793
    %858 = vst [vmem:[#allocation2 + $0x40] sm:$0xff] %v794
    %859 = vst [vmem:[#allocation2 + $0x48] sm:$0xff] %v795
    %860 = vst [vmem:[#allocation2 + $0x50] sm:$0xff] %v796
    %861 = vst [vmem:[#allocation2 + $0x58] sm:$0xff] %v797
    %862 = vst [vmem:[#allocation2 + $0x60] sm:$0xff] %v798
    %863 = vst [vmem:[#allocation2 + $0x68] sm:$0xff] %v799
    %864 = vst [vmem:[#allocation2 + $0x70] sm:$0xff] %v800
    %865 = vst [vmem:[#allocation2 + $0x78] sm:$0xff] %v801
    %866 = vst [vmem:[#allocation2 + $0x80] sm:$0xff] %v802
    %867 = vst [vmem:[#allocation2 + $0x88] sm:$0xff] %v803
    %868 = vst [vmem:[#allocation2 + $0x90] sm:$0xff] %v804
    %869 = vst [vmem:[#allocation2 + $0x98] sm:$0xff] %v805
    %870 = vst [vmem:[#allocation2 + $0xa0] sm:$0xff] %v806
    %871 = vst [vmem:[#allocation2 + $0xa8] sm:$0xff] %v807
    %872 = vst [vmem:[#allocation2 + $0xb0] sm:$0xff] %v808
    %873 = vst [vmem:[#allocation2 + $0xb8] sm:$0xff] %v809
    %874 = vst [vmem:[#allocation2 + $0xc0] sm:$0xff] %v810
    %875 = vst [vmem:[#allocation2 + $0xc8] sm:$0xff] %v811
    %876 = vst [vmem:[#allocation2 + $0xd0] sm:$0xff] %v812
    %877 = vst [vmem:[#allocation2 + $0xd8] sm:$0xff] %v813
    %878 = vst [vmem:[#allocation2 + $0xe0] sm:$0xff] %v814
    %879 = vst [vmem:[#allocation2 + $0xe8] sm:$0xff] %v815
    %880 = vst [vmem:[#allocation2 + $0xf0] sm:$0xff] %v816
    %881 = vst [vmem:[#allocation2 + $0xf8] sm:$0xff] %v817
    %882 = vst [vmem:[#allocation2 + $0x100] sm:$0xff] %v818
    %883 = vst [vmem:[#allocation2 + $0x108] sm:$0xff] %v819
    %884 = vst [vmem:[#allocation2 + $0x110] sm:$0xff] %v820
    %885 = vst [vmem:[#allocation2 + $0x118] sm:$0xff] %v821
    %886 = vst [vmem:[#allocation2 + $0x120] sm:$0xff] %v822
    %887 = vst [vmem:[#allocation2 + $0x128] sm:$0xff] %v823
    %888 = vst [vmem:[#allocation2 + $0x130] sm:$0xff] %v824
    %889 = vst [vmem:[#allocation2 + $0x138] sm:$0xff] %v825
    %890 = vst [vmem:[#allocation2 + $0x140] sm:$0xff] %v826
    %891 = vst [vmem:[#allocation2 + $0x148] sm:$0xff] %v827
    %892 = vst [vmem:[#allocation2 + $0x150] sm:$0xff] %v828
    %893 = vst [vmem:[#allocation2 + $0x158] sm:$0xff] %v829
    %894 = vst [vmem:[#allocation2 + $0x160] sm:$0xff] %v830
    %895 = vst [vmem:[#allocation2 + $0x168] sm:$0xff] %v831
    %896 = vst [vmem:[#allocation2 + $0x170] sm:$0xff] %v832
    %897 = vst [vmem:[#allocation2 + $0x178] sm:$0xff] %v833
    %898 = vst [vmem:[#allocation2 + $0x180] sm:$0xff] %v834
    %899 = vst [vmem:[#allocation2 + $0x188] sm:$0xff] %v835
    %900 = vst [vmem:[#allocation2 + $0x190] sm:$0xff] %v836
    %901 = vst [vmem:[#allocation2 + $0x198] sm:$0xff] %v837
    %902 = vst [vmem:[#allocation2 + $0x1a0] sm:$0xff] %v838
    %903 = vst [vmem:[#allocation2 + $0x1a8] sm:$0xff] %v839
    %904 = vst [vmem:[#allocation2 + $0x1b0] sm:$0xff] %v840
    %905 = vst [vmem:[#allocation2 + $0x1b8] sm:$0xff] %v841
    %906 = vst [vmem:[#allocation2 + $0x1c0] sm:$0xff] %v842
    %907 = vst [vmem:[#allocation2 + $0x1c8] sm:$0xff] %v843
    %908 = vst [vmem:[#allocation2 + $0x1d0] sm:$0xff] %v844
    %909 = vst [vmem:[#allocation2 + $0x1d8] sm:$0xff] %v845
    %910 = vst [vmem:[#allocation2 + $0x1e0] sm:$0xff] %v846
    %911 = vst [vmem:[#allocation2 + $0x1e8] sm:$0xff] %v847
    %912 = vst [vmem:[#allocation2 + $0x1f0] sm:$0xff] %v848
    %913 = vst [vmem:[#allocation2 + $0x1f8] sm:$0xff] %v849
    // Predicated region
    $region22: #{tpu_custom_call.1} parent=1 // pred_check
      %p914 = pneg %p45
    $region23: #{tpu_custom_call.1} parent=1 // pred_check_branch
      %916 = sbr.rel (%p914) target = $region25
    $region24: #{tpu_custom_call.1} parent=1 // pred_region
      %v917 = vld [vmem:[#allocation2] sm:$0xff]
      %v918 = vld [vmem:[#allocation2 + $0x8] sm:$0xff]
      %v919 = vld [vmem:[#allocation2 + $0x10] sm:$0xff]
      %v920 = vld [vmem:[#allocation2 + $0x18] sm:$0xff]
      %v921 = vld [vmem:[#allocation2 + $0x20] sm:$0xff]
      %v922 = vld [vmem:[#allocation2 + $0x28] sm:$0xff]
      %v923 = vld [vmem:[#allocation2 + $0x30] sm:$0xff]
      %v924 = vld [vmem:[#allocation2 + $0x38] sm:$0xff]
      %v925 = vld [vmem:[#allocation2 + $0x40] sm:$0xff]
      %v926 = vld [vmem:[#allocation2 + $0x48] sm:$0xff]
      %v927 = vld [vmem:[#allocation2 + $0x50] sm:$0xff]
      %v928 = vld [vmem:[#allocation2 + $0x58] sm:$0xff]
      %v929 = vld [vmem:[#allocation2 + $0x60] sm:$0xff]
      %v930 = vld [vmem:[#allocation2 + $0x68] sm:$0xff]
      %v931 = vld [vmem:[#allocation2 + $0x70] sm:$0xff]
      %v932 = vld [vmem:[#allocation2 + $0x78] sm:$0xff]
      %v933 = vld [vmem:[#allocation2 + $0x80] sm:$0xff]
      %v934 = vld [vmem:[#allocation2 + $0x88] sm:$0xff]
      %v935 = vld [vmem:[#allocation2 + $0x90] sm:$0xff]
      %v936 = vld [vmem:[#allocation2 + $0x98] sm:$0xff]
      %v937 = vld [vmem:[#allocation2 + $0xa0] sm:$0xff]
      %v938 = vld [vmem:[#allocation2 + $0xa8] sm:$0xff]
      %v939 = vld [vmem:[#allocation2 + $0xb0] sm:$0xff]
      %v940 = vld [vmem:[#allocation2 + $0xb8] sm:$0xff]
      %v941 = vld [vmem:[#allocation2 + $0xc0] sm:$0xff]
      %v942 = vld [vmem:[#allocation2 + $0xc8] sm:$0xff]
      %v943 = vld [vmem:[#allocation2 + $0xd0] sm:$0xff]
      %v944 = vld [vmem:[#allocation2 + $0xd8] sm:$0xff]
      %v945 = vld [vmem:[#allocation2 + $0xe0] sm:$0xff]
      %v946 = vld [vmem:[#allocation2 + $0xe8] sm:$0xff]
      %v947 = vld [vmem:[#allocation2 + $0xf0] sm:$0xff]
      %v948 = vld [vmem:[#allocation2 + $0xf8] sm:$0xff]
      %v949 = vld [vmem:[#allocation2 + $0x100] sm:$0xff]
      %v950 = vld [vmem:[#allocation2 + $0x108] sm:$0xff]
      %v951 = vld [vmem:[#allocation2 + $0x110] sm:$0xff]
      %v952 = vld [vmem:[#allocation2 + $0x118] sm:$0xff]
      %v953 = vld [vmem:[#allocation2 + $0x120] sm:$0xff]
      %v954 = vld [vmem:[#allocation2 + $0x128] sm:$0xff]
      %v955 = vld [vmem:[#allocation2 + $0x130] sm:$0xff]
      %v956 = vld [vmem:[#allocation2 + $0x138] sm:$0xff]
      %v957 = vld [vmem:[#allocation2 + $0x140] sm:$0xff]
      %v958 = vld [vmem:[#allocation2 + $0x148] sm:$0xff]
      %v959 = vld [vmem:[#allocation2 + $0x150] sm:$0xff]
      %v960 = vld [vmem:[#allocation2 + $0x158] sm:$0xff]
      %v961 = vld [vmem:[#allocation2 + $0x160] sm:$0xff]
      %v962 = vld [vmem:[#allocation2 + $0x168] sm:$0xff]
      %v963 = vld [vmem:[#allocation2 + $0x170] sm:$0xff]
      %v964 = vld [vmem:[#allocation2 + $0x178] sm:$0xff]
      %v965 = vld [vmem:[#allocation2 + $0x180] sm:$0xff]
      %v966 = vld [vmem:[#allocation2 + $0x188] sm:$0xff]
      %v967 = vld [vmem:[#allocation2 + $0x190] sm:$0xff]
      %v968 = vld [vmem:[#allocation2 + $0x198] sm:$0xff]
      %v969 = vld [vmem:[#allocation2 + $0x1a0] sm:$0xff]
      %v970 = vld [vmem:[#allocation2 + $0x1a8] sm:$0xff]
      %v971 = vld [vmem:[#allocation2 + $0x1b0] sm:$0xff]
      %v972 = vld [vmem:[#allocation2 + $0x1b8] sm:$0xff]
      %v973 = vld [vmem:[#allocation2 + $0x1c0] sm:$0xff]
      %v974 = vld [vmem:[#allocation2 + $0x1c8] sm:$0xff]
      %v975 = vld [vmem:[#allocation2 + $0x1d0] sm:$0xff]
      %v976 = vld [vmem:[#allocation2 + $0x1d8] sm:$0xff]
      %v977 = vld [vmem:[#allocation2 + $0x1e0] sm:$0xff]
      %v978 = vld [vmem:[#allocation2 + $0x1e8] sm:$0xff]
      %v979 = vld [vmem:[#allocation2 + $0x1f0] sm:$0xff]
      %v980 = vld [vmem:[#allocation2 + $0x1f8] sm:$0xff]
      %v981 = vadd.f32 %v917, %v918
      %v982 = vadd.f32 %v981, %v919
      %v983 = vadd.f32 %v982, %v920
      %v984 = vadd.f32 %v983, %v921
      %v985 = vadd.f32 %v984, %v922
      %v986 = vadd.f32 %v985, %v923
      %v987 = vadd.f32 %v986, %v924
      %v988 = vadd.f32 %v987, %v925
      %v989 = vadd.f32 %v988, %v926
      %v990 = vadd.f32 %v989, %v927
      %v991 = vadd.f32 %v990, %v928
      %v992 = vadd.f32 %v991, %v929
      %v993 = vadd.f32 %v992, %v930
      %v994 = vadd.f32 %v993, %v931
      %v995 = vadd.f32 %v994, %v932
      %v996 = vadd.f32 %v995, %v933
      %v997 = vadd.f32 %v996, %v934
      %v998 = vadd.f32 %v997, %v935
      %v999 = vadd.f32 %v998, %v936
      %v1000 = vadd.f32 %v999, %v937
      %v1001 = vadd.f32 %v1000, %v938
      %v1002 = vadd.f32 %v1001, %v939
      %v1003 = vadd.f32 %v1002, %v940
      %v1004 = vadd.f32 %v1003, %v941
      %v1005 = vadd.f32 %v1004, %v942
      %v1006 = vadd.f32 %v1005, %v943
      %v1007 = vadd.f32 %v1006, %v944
      %v1008 = vadd.f32 %v1007, %v945
      %v1009 = vadd.f32 %v1008, %v946
      %v1010 = vadd.f32 %v1009, %v947
      %v1011 = vadd.f32 %v1010, %v948
      %v1012 = vadd.f32 %v1011, %v949
      %v1013 = vadd.f32 %v1012, %v950
      %v1014 = vadd.f32 %v1013, %v951
      %v1015 = vadd.f32 %v1014, %v952
      %v1016 = vadd.f32 %v1015, %v953
      %v1017 = vadd.f32 %v1016, %v954
      %v1018 = vadd.f32 %v1017, %v955
      %v1019 = vadd.f32 %v1018, %v956
      %v1020 = vadd.f32 %v1019, %v957
      %v1021 = vadd.f32 %v1020, %v958
      %v1022 = vadd.f32 %v1021, %v959
      %v1023 = vadd.f32 %v1022, %v960
      %v1024 = vadd.f32 %v1023, %v961
      %v1025 = vadd.f32 %v1024, %v962
      %v1026 = vadd.f32 %v1025, %v963
      %v1027 = vadd.f32 %v1026, %v964
      %v1028 = vadd.f32 %v1027, %v965
      %v1029 = vadd.f32 %v1028, %v966
      %v1030 = vadd.f32 %v1029, %v967
      %v1031 = vadd.f32 %v1030, %v968
      %v1032 = vadd.f32 %v1031, %v969
      %v1033 = vadd.f32 %v1032, %v970
      %v1034 = vadd.f32 %v1033, %v971
      %v1035 = vadd.f32 %v1034, %v972
      %v1036 = vadd.f32 %v1035, %v973
      %v1037 = vadd.f32 %v1036, %v974
      %v1038 = vadd.f32 %v1037, %v975
      %v1039 = vadd.f32 %v1038, %v976
      %v1040 = vadd.f32 %v1039, %v977
      %v1041 = vadd.f32 %v1040, %v978
      %v1042 = vadd.f32 %v1041, %v979
      %v1043 = vadd.f32 %v1042, %v980
      %1044 = vst [vmem:[#allocation9] sm:$0xff] %v1043
      %v1045 = vmul.f32 %v917, %v917
      %v1046 = vmul.f32 %v918, %v918
      %v1047 = vmul.f32 %v919, %v919
      %v1048 = vmul.f32 %v920, %v920
      %v1049 = vmul.f32 %v921, %v921
      %v1050 = vmul.f32 %v922, %v922
      %v1051 = vmul.f32 %v923, %v923
      %v1052 = vmul.f32 %v924, %v924
      %v1053 = vmul.f32 %v925, %v925
      %v1054 = vmul.f32 %v926, %v926
      %v1055 = vmul.f32 %v927, %v927
      %v1056 = vmul.f32 %v928, %v928
      %v1057 = vmul.f32 %v929, %v929
      %v1058 = vmul.f32 %v930, %v930
      %v1059 = vmul.f32 %v931, %v931
      %v1060 = vmul.f32 %v932, %v932
      %v1061 = vmul.f32 %v933, %v933
      %v1062 = vmul.f32 %v934, %v934
      %v1063 = vmul.f32 %v935, %v935
      %v1064 = vmul.f32 %v936, %v936
      %v1065 = vmul.f32 %v937, %v937
      %v1066 = vmul.f32 %v938, %v938
      %v1067 = vmul.f32 %v939, %v939
      %v1068 = vmul.f32 %v940, %v940
      %v1069 = vmul.f32 %v941, %v941
      %v1070 = vmul.f32 %v942, %v942
      %v1071 = vmul.f32 %v943, %v943
      %v1072 = vmul.f32 %v944, %v944
      %v1073 = vmul.f32 %v945, %v945
      %v1074 = vmul.f32 %v946, %v946
      %v1075 = vmul.f32 %v947, %v947
      %v1076 = vmul.f32 %v948, %v948
      %v1077 = vmul.f32 %v949, %v949
      %v1078 = vmul.f32 %v950, %v950
      %v1079 = vmul.f32 %v951, %v951
      %v1080 = vmul.f32 %v952, %v952
      %v1081 = vmul.f32 %v953, %v953
      %v1082 = vmul.f32 %v954, %v954
      %v1083 = vmul.f32 %v955, %v955
      %v1084 = vmul.f32 %v956, %v956
      %v1085 = vmul.f32 %v957, %v957
      %v1086 = vmul.f32 %v958, %v958
      %v1087 = vmul.f32 %v959, %v959
      %v1088 = vmul.f32 %v960, %v960
      %v1089 = vmul.f32 %v961, %v961
      %v1090 = vmul.f32 %v962, %v962
      %v1091 = vmul.f32 %v963, %v963
      %v1092 = vmul.f32 %v964, %v964
      %v1093 = vmul.f32 %v965, %v965
      %v1094 = vmul.f32 %v966, %v966
      %v1095 = vmul.f32 %v967, %v967
      %v1096 = vmul.f32 %v968, %v968
      %v1097 = vmul.f32 %v969, %v969
      %v1098 = vmul.f32 %v970, %v970
      %v1099 = vmul.f32 %v971, %v971
      %v1100 = vmul.f32 %v972, %v972
      %v1101 = vmul.f32 %v973, %v973
      %v1102 = vmul.f32 %v974, %v974
      %v1103 = vmul.f32 %v975, %v975
      %v1104 = vmul.f32 %v976, %v976
      %v1105 = vmul.f32 %v977, %v977
      %v1106 = vmul.f32 %v978, %v978
      %v1107 = vmul.f32 %v979, %v979
      %v1108 = vmul.f32 %v980, %v980
      %v1109 = vadd.f32 %v1045, %v1046
      %v1110 = vadd.f32 %v1109, %v1047
      %v1111 = vadd.f32 %v1110, %v1048
      %v1112 = vadd.f32 %v1111, %v1049
      %v1113 = vadd.f32 %v1112, %v1050
      %v1114 = vadd.f32 %v1113, %v1051
      %v1115 = vadd.f32 %v1114, %v1052
      %v1116 = vadd.f32 %v1115, %v1053
      %v1117 = vadd.f32 %v1116, %v1054
      %v1118 = vadd.f32 %v1117, %v1055
      %v1119 = vadd.f32 %v1118, %v1056
      %v1120 = vadd.f32 %v1119, %v1057
      %v1121 = vadd.f32 %v1120, %v1058
      %v1122 = vadd.f32 %v1121, %v1059
      %v1123 = vadd.f32 %v1122, %v1060
      %v1124 = vadd.f32 %v1123, %v1061
      %v1125 = vadd.f32 %v1124, %v1062
      %v1126 = vadd.f32 %v1125, %v1063
      %v1127 = vadd.f32 %v1126, %v1064
      %v1128 = vadd.f32 %v1127, %v1065
      %v1129 = vadd.f32 %v1128, %v1066
      %v1130 = vadd.f32 %v1129, %v1067
      %v1131 = vadd.f32 %v1130, %v1068
      %v1132 = vadd.f32 %v1131, %v1069
      %v1133 = vadd.f32 %v1132, %v1070
      %v1134 = vadd.f32 %v1133, %v1071
      %v1135 = vadd.f32 %v1134, %v1072
      %v1136 = vadd.f32 %v1135, %v1073
      %v1137 = vadd.f32 %v1136, %v1074
      %v1138 = vadd.f32 %v1137, %v1075
      %v1139 = vadd.f32 %v1138, %v1076
      %v1140 = vadd.f32 %v1139, %v1077
      %v1141 = vadd.f32 %v1140, %v1078
      %v1142 = vadd.f32 %v1141, %v1079
      %v1143 = vadd.f32 %v1142, %v1080
      %v1144 = vadd.f32 %v1143, %v1081
      %v1145 = vadd.f32 %v1144, %v1082
      %v1146 = vadd.f32 %v1145, %v1083
      %v1147 = vadd.f32 %v1146, %v1084
      %v1148 = vadd.f32 %v1147, %v1085
      %v1149 = vadd.f32 %v1148, %v1086
      %v1150 = vadd.f32 %v1149, %v1087
      %v1151 = vadd.f32 %v1150, %v1088
      %v1152 = vadd.f32 %v1151, %v1089
      %v1153 = vadd.f32 %v1152, %v1090
      %v1154 = vadd.f32 %v1153, %v1091
      %v1155 = vadd.f32 %v1154, %v1092
      %v1156 = vadd.f32 %v1155, %v1093
      %v1157 = vadd.f32 %v1156, %v1094
      %v1158 = vadd.f32 %v1157, %v1095
      %v1159 = vadd.f32 %v1158, %v1096
      %v1160 = vadd.f32 %v1159, %v1097
      %v1161 = vadd.f32 %v1160, %v1098
      %v1162 = vadd.f32 %v1161, %v1099
      %v1163 = vadd.f32 %v1162, %v1100
      %v1164 = vadd.f32 %v1163, %v1101
      %v1165 = vadd.f32 %v1164, %v1102
      %v1166 = vadd.f32 %v1165, %v1103
      %v1167 = vadd.f32 %v1166, %v1104
      %v1168 = vadd.f32 %v1167, %v1105
      %v1169 = vadd.f32 %v1168, %v1106
      %v1170 = vadd.f32 %v1169, %v1107
      %v1171 = vadd.f32 %v1170, %v1108
      %1172 = vst [vmem:[#allocation11] sm:$0xff] %v1171
      %v1173 = vpack.c.bf16 %v918, %v917
      %v1174 = vpack.c.bf16 %v920, %v919
      %v1175 = vpack.c.bf16 %v922, %v921
      %v1176 = vpack.c.bf16 %v924, %v923
      %v1177 = vpack.c.bf16 %v926, %v925
      %v1178 = vpack.c.bf16 %v928, %v927
      %v1179 = vpack.c.bf16 %v930, %v929
      %v1180 = vpack.c.bf16 %v932, %v931
      %v1181 = vpack.c.bf16 %v934, %v933
      %v1182 = vpack.c.bf16 %v936, %v935
      %v1183 = vpack.c.bf16 %v938, %v937
      %v1184 = vpack.c.bf16 %v940, %v939
      %v1185 = vpack.c.bf16 %v942, %v941
      %v1186 = vpack.c.bf16 %v944, %v943
      %v1187 = vpack.c.bf16 %v946, %v945
      %v1188 = vpack.c.bf16 %v948, %v947
      %v1189 = vpack.c.bf16 %v950, %v949
      %v1190 = vpack.c.bf16 %v952, %v951
      %v1191 = vpack.c.bf16 %v954, %v953
      %v1192 = vpack.c.bf16 %v956, %v955
      %v1193 = vpack.c.bf16 %v958, %v957
      %v1194 = vpack.c.bf16 %v960, %v959
      %v1195 = vpack.c.bf16 %v962, %v961
      %v1196 = vpack.c.bf16 %v964, %v963
      %v1197 = vpack.c.bf16 %v966, %v965
      %v1198 = vpack.c.bf16 %v968, %v967
      %v1199 = vpack.c.bf16 %v970, %v969
      %v1200 = vpack.c.bf16 %v972, %v971
      %v1201 = vpack.c.bf16 %v974, %v973
      %v1202 = vpack.c.bf16 %v976, %v975
      %v1203 = vpack.c.bf16 %v978, %v977
      %v1204 = vpack.c.bf16 %v980, %v979
      %v1237 = vunpack.c.l.b16 %v1173
      %v1238 = vunpack.c.h.b16 %v1173
      %v1239 = vunpack.c.l.b16 %v1174
      %v1240 = vunpack.c.h.b16 %v1174
      %v1241 = vunpack.c.l.b16 %v1175
      %v1242 = vunpack.c.h.b16 %v1175
      %v1243 = vunpack.c.l.b16 %v1176
      %v1244 = vunpack.c.h.b16 %v1176
      %v1245 = vunpack.c.l.b16 %v1177
      %v1246 = vunpack.c.h.b16 %v1177
      %v1247 = vunpack.c.l.b16 %v1178
      %v1248 = vunpack.c.h.b16 %v1178
      %v1249 = vunpack.c.l.b16 %v1179
      %v1250 = vunpack.c.h.b16 %v1179
      %v1251 = vunpack.c.l.b16 %v1180
      %v1252 = vunpack.c.h.b16 %v1180
      %v1253 = vunpack.c.l.b16 %v1181
      %v1254 = vunpack.c.h.b16 %v1181
      %v1255 = vunpack.c.l.b16 %v1182
      %v1256 = vunpack.c.h.b16 %v1182
      %v1257 = vunpack.c.l.b16 %v1183
      %v1258 = vunpack.c.h.b16 %v1183
      %v1259 = vunpack.c.l.b16 %v1184
      %v1260 = vunpack.c.h.b16 %v1184
      %v1261 = vunpack.c.l.b16 %v1185
      %v1262 = vunpack.c.h.b16 %v1185
      %v1263 = vunpack.c.l.b16 %v1186
      %v1264 = vunpack.c.h.b16 %v1186
      %v1265 = vunpack.c.l.b16 %v1187
      %v1266 = vunpack.c.h.b16 %v1187
      %v1267 = vunpack.c.l.b16 %v1188
      %v1268 = vunpack.c.h.b16 %v1188
      %v1269 = vunpack.c.l.b16 %v1189
      %v1270 = vunpack.c.h.b16 %v1189
      %v1271 = vunpack.c.l.b16 %v1190
      %v1272 = vunpack.c.h.b16 %v1190
      %v1273 = vunpack.c.l.b16 %v1191
      %v1274 = vunpack.c.h.b16 %v1191
      %v1275 = vunpack.c.l.b16 %v1192
      %v1276 = vunpack.c.h.b16 %v1192
      %v1277 = vunpack.c.l.b16 %v1193
      %v1278 = vunpack.c.h.b16 %v1193
      %v1279 = vunpack.c.l.b16 %v1194
      %v1280 = vunpack.c.h.b16 %v1194
      %v1281 = vunpack.c.l.b16 %v1195
      %v1282 = vunpack.c.h.b16 %v1195
      %v1283 = vunpack.c.l.b16 %v1196
      %v1284 = vunpack.c.h.b16 %v1196
      %v1285 = vunpack.c.l.b16 %v1197
      %v1286 = vunpack.c.h.b16 %v1197
      %v1287 = vunpack.c.l.b16 %v1198
      %v1288 = vunpack.c.h.b16 %v1198
      %v1289 = vunpack.c.l.b16 %v1199
      %v1290 = vunpack.c.h.b16 %v1199
      %v1291 = vunpack.c.l.b16 %v1200
      %v1292 = vunpack.c.h.b16 %v1200
      %v1293 = vunpack.c.l.b16 %v1201
      %v1294 = vunpack.c.h.b16 %v1201
      %v1295 = vunpack.c.l.b16 %v1202
      %v1296 = vunpack.c.h.b16 %v1202
      %v1297 = vunpack.c.l.b16 %v1203
      %v1298 = vunpack.c.h.b16 %v1203
      %v1299 = vunpack.c.l.b16 %v1204
      %v1300 = vunpack.c.h.b16 %v1204
      %v1301 = vpack.c.b16 %v1237, %v1237
      %v1302 = vpack.c.b16 %v1238, %v1238
      %v1303 = vpack.c.b16 %v1239, %v1239
      %v1304 = vpack.c.b16 %v1240, %v1240
      %v1305 = vpack.c.b16 %v1241, %v1241
      %v1306 = vpack.c.b16 %v1242, %v1242
      %v1307 = vpack.c.b16 %v1243, %v1243
      %v1308 = vpack.c.b16 %v1244, %v1244
      %v1309 = vpack.c.b16 %v1245, %v1245
      %v1310 = vpack.c.b16 %v1246, %v1246
      %v1311 = vpack.c.b16 %v1247, %v1247
      %v1312 = vpack.c.b16 %v1248, %v1248
      %v1313 = vpack.c.b16 %v1249, %v1249
      %v1314 = vpack.c.b16 %v1250, %v1250
      %v1315 = vpack.c.b16 %v1251, %v1251
      %v1316 = vpack.c.b16 %v1252, %v1252
      %v1317 = vpack.c.b16 %v1253, %v1253
      %v1318 = vpack.c.b16 %v1254, %v1254
      %v1319 = vpack.c.b16 %v1255, %v1255
      %v1320 = vpack.c.b16 %v1256, %v1256
      %v1321 = vpack.c.b16 %v1257, %v1257
      %v1322 = vpack.c.b16 %v1258, %v1258
      %v1323 = vpack.c.b16 %v1259, %v1259
      %v1324 = vpack.c.b16 %v1260, %v1260
      %v1325 = vpack.c.b16 %v1261, %v1261
      %v1326 = vpack.c.b16 %v1262, %v1262
      %v1327 = vpack.c.b16 %v1263, %v1263
      %v1328 = vpack.c.b16 %v1264, %v1264
      %v1329 = vpack.c.b16 %v1265, %v1265
      %v1330 = vpack.c.b16 %v1266, %v1266
      %v1331 = vpack.c.b16 %v1267, %v1267
      %v1332 = vpack.c.b16 %v1268, %v1268
      %v1333 = vpack.c.b16 %v1269, %v1269
      %v1334 = vpack.c.b16 %v1270, %v1270
      %v1335 = vpack.c.b16 %v1271, %v1271
      %v1336 = vpack.c.b16 %v1272, %v1272
      %v1337 = vpack.c.b16 %v1273, %v1273
      %v1338 = vpack.c.b16 %v1274, %v1274
      %v1339 = vpack.c.b16 %v1275, %v1275
      %v1340 = vpack.c.b16 %v1276, %v1276
      %v1341 = vpack.c.b16 %v1277, %v1277
      %v1342 = vpack.c.b16 %v1278, %v1278
      %v1343 = vpack.c.b16 %v1279, %v1279
      %v1344 = vpack.c.b16 %v1280, %v1280
      %v1345 = vpack.c.b16 %v1281, %v1281
      %v1346 = vpack.c.b16 %v1282, %v1282
      %v1347 = vpack.c.b16 %v1283, %v1283
      %v1348 = vpack.c.b16 %v1284, %v1284
      %v1349 = vpack.c.b16 %v1285, %v1285
      %v1350 = vpack.c.b16 %v1286, %v1286
      %v1351 = vpack.c.b16 %v1287, %v1287
      %v1352 = vpack.c.b16 %v1288, %v1288
      %v1353 = vpack.c.b16 %v1289, %v1289
      %v1354 = vpack.c.b16 %v1290, %v1290
      %v1355 = vpack.c.b16 %v1291, %v1291
      %v1356 = vpack.c.b16 %v1292, %v1292
      %v1357 = vpack.c.b16 %v1293, %v1293
      %v1358 = vpack.c.b16 %v1294, %v1294
      %v1359 = vpack.c.b16 %v1295, %v1295
      %v1360 = vpack.c.b16 %v1296, %v1296
      %v1361 = vpack.c.b16 %v1297, %v1297
      %v1362 = vpack.c.b16 %v1298, %v1298
      %v1363 = vpack.c.b16 %v1299, %v1299
      %v1364 = vpack.c.b16 %v1300, %v1300
      %1429 = vst [vmem:[#allocation8] sm:$0xf] %v1301
      %1430 = vst [vmem:[#allocation8 + $0x4] sm:$0xf] %v1302
      %1431 = vst [vmem:[#allocation8 + $0x8] sm:$0xf] %v1303
      %1432 = vst [vmem:[#allocation8 + $0xc] sm:$0xf] %v1304
      %1433 = vst [vmem:[#allocation8 + $0x10] sm:$0xf] %v1305
      %1434 = vst [vmem:[#allocation8 + $0x14] sm:$0xf] %v1306
      %1435 = vst [vmem:[#allocation8 + $0x18] sm:$0xf] %v1307
      %1436 = vst [vmem:[#allocation8 + $0x1c] sm:$0xf] %v1308
      %1437 = vst [vmem:[#allocation8 + $0x20] sm:$0xf] %v1309
      %1438 = vst [vmem:[#allocation8 + $0x24] sm:$0xf] %v1310
      %1439 = vst [vmem:[#allocation8 + $0x28] sm:$0xf] %v1311
      %1440 = vst [vmem:[#allocation8 + $0x2c] sm:$0xf] %v1312
      %1441 = vst [vmem:[#allocation8 + $0x30] sm:$0xf] %v1313
      %1442 = vst [vmem:[#allocation8 + $0x34] sm:$0xf] %v1314
      %1443 = vst [vmem:[#allocation8 + $0x38] sm:$0xf] %v1315
      %1444 = vst [vmem:[#allocation8 + $0x3c] sm:$0xf] %v1316
      %1445 = vst [vmem:[#allocation8 + $0x40] sm:$0xf] %v1317
      %1446 = vst [vmem:[#allocation8 + $0x44] sm:$0xf] %v1318
      %1447 = vst [vmem:[#allocation8 + $0x48] sm:$0xf] %v1319
      %1448 = vst [vmem:[#allocation8 + $0x4c] sm:$0xf] %v1320
      %1449 = vst [vmem:[#allocation8 + $0x50] sm:$0xf] %v1321
      %1450 = vst [vmem:[#allocation8 + $0x54] sm:$0xf] %v1322
      %1451 = vst [vmem:[#allocation8 + $0x58] sm:$0xf] %v1323
      %1452 = vst [vmem:[#allocation8 + $0x5c] sm:$0xf] %v1324
      %1453 = vst [vmem:[#allocation8 + $0x60] sm:$0xf] %v1325
      %1454 = vst [vmem:[#allocation8 + $0x64] sm:$0xf] %v1326
      %1455 = vst [vmem:[#allocation8 + $0x68] sm:$0xf] %v1327
      %1456 = vst [vmem:[#allocation8 + $0x6c] sm:$0xf] %v1328
      %1457 = vst [vmem:[#allocation8 + $0x70] sm:$0xf] %v1329
      %1458 = vst [vmem:[#allocation8 + $0x74] sm:$0xf] %v1330
      %1459 = vst [vmem:[#allocation8 + $0x78] sm:$0xf] %v1331
      %1460 = vst [vmem:[#allocation8 + $0x7c] sm:$0xf] %v1332
      %1461 = vst [vmem:[#allocation8 + $0x80] sm:$0xf] %v1333
      %1462 = vst [vmem:[#allocation8 + $0x84] sm:$0xf] %v1334
      %1463 = vst [vmem:[#allocation8 + $0x88] sm:$0xf] %v1335
      %1464 = vst [vmem:[#allocation8 + $0x8c] sm:$0xf] %v1336
      %1465 = vst [vmem:[#allocation8 + $0x90] sm:$0xf] %v1337
      %1466 = vst [vmem:[#allocation8 + $0x94] sm:$0xf] %v1338
      %1467 = vst [vmem:[#allocation8 + $0x98] sm:$0xf] %v1339
      %1468 = vst [vmem:[#allocation8 + $0x9c] sm:$0xf] %v1340
      %1469 = vst [vmem:[#allocation8 + $0xa0] sm:$0xf] %v1341
      %1470 = vst [vmem:[#allocation8 + $0xa4] sm:$0xf] %v1342
      %1471 = vst [vmem:[#allocation8 + $0xa8] sm:$0xf] %v1343
      %1472 = vst [vmem:[#allocation8 + $0xac] sm:$0xf] %v1344
      %1473 = vst [vmem:[#allocation8 + $0xb0] sm:$0xf] %v1345
      %1474 = vst [vmem:[#allocation8 + $0xb4] sm:$0xf] %v1346
      %1475 = vst [vmem:[#allocation8 + $0xb8] sm:$0xf] %v1347
      %1476 = vst [vmem:[#allocation8 + $0xbc] sm:$0xf] %v1348
      %1477 = vst [vmem:[#allocation8 + $0xc0] sm:$0xf] %v1349
      %1478 = vst [vmem:[#allocation8 + $0xc4] sm:$0xf] %v1350
      %1479 = vst [vmem:[#allocation8 + $0xc8] sm:$0xf] %v1351
      %1480 = vst [vmem:[#allocation8 + $0xcc] sm:$0xf] %v1352
      %1481 = vst [vmem:[#allocation8 + $0xd0] sm:$0xf] %v1353
      %1482 = vst [vmem:[#allocation8 + $0xd4] sm:$0xf] %v1354
      %1483 = vst [vmem:[#allocation8 + $0xd8] sm:$0xf] %v1355
      %1484 = vst [vmem:[#allocation8 + $0xdc] sm:$0xf] %v1356
      %1485 = vst [vmem:[#allocation8 + $0xe0] sm:$0xf] %v1357
      %1486 = vst [vmem:[#allocation8 + $0xe4] sm:$0xf] %v1358
      %1487 = vst [vmem:[#allocation8 + $0xe8] sm:$0xf] %v1359
      %1488 = vst [vmem:[#allocation8 + $0xec] sm:$0xf] %v1360
      %1489 = vst [vmem:[#allocation8 + $0xf0] sm:$0xf] %v1361
      %1490 = vst [vmem:[#allocation8 + $0xf4] sm:$0xf] %v1362
      %1491 = vst [vmem:[#allocation8 + $0xf8] sm:$0xf] %v1363
      %1492 = vst [vmem:[#allocation8 + $0xfc] sm:$0xf] %v1364
    $region25: #{tpu_custom_call.1} parent=1 // pred_fallthru
      _
    // Predicated region
    $region26: #{tpu_custom_call.1} parent=1 // pred_check
      _
    $region27: #{tpu_custom_call.1} parent=1 // pred_check_branch
      %1494 = sbr.rel (0) target = $region29
    $region28: #{tpu_custom_call.1} parent=1 // pred_region
      %s1496 = ssub.s32 4096, 4096
      %1497 = vsyncadd [#allocation5], %s1496
      %s1498 = sshll.u32 [#allocation8], 4
      %s1499 = int_to_ptr.vmem [resolvable:$true] %s1498
      %1504 = dma.vmem_to_hbm [thread:$0]  %s1499, 4096, %s2, [#allocation5], 64, 64, 4
    $region29: #{tpu_custom_call.1} parent=1 // pred_fallthru
      _
    // Predicated region
    $region30: #{tpu_custom_call.1} parent=1 // pred_check
      _
    $region31: #{tpu_custom_call.1} parent=1 // pred_check_branch
      %1506 = sbr.rel (0) target = $region33
    $region32: #{tpu_custom_call.1} parent=1 // pred_region
      %s1508 = ssub.s32 128, 128
      %1509 = vsyncadd [#allocation10], %s1508
      %s1511 = sshll.u32 [#allocation9], 4
      %s1512 = int_to_ptr.vmem [resolvable:$true] %s1511
      %1514 = dma.vmem_to_hbm [thread:$0]  %s1512, 128, %s3, [#allocation10]
    $region33: #{tpu_custom_call.1} parent=1 // pred_fallthru
      _
    // Predicated region
    $region34: #{tpu_custom_call.1} parent=1 // pred_check
      _
    $region35: #{tpu_custom_call.1} parent=1 // pred_check_branch
      %1516 = sbr.rel (0) target = $region37
    $region36: #{tpu_custom_call.1} parent=1 // pred_region
      %s1518 = ssub.s32 128, 128
      %1519 = vsyncadd [#allocation10], %s1518
      %s1521 = sshll.u32 [#allocation11], 4
      %s1522 = int_to_ptr.vmem [resolvable:$true] %s1521
      %1524 = dma.vmem_to_hbm [thread:$0]  %s1522, 128, %s4, [#allocation10]
    $region37: #{tpu_custom_call.1} parent=1 // pred_fallthru
      _
    // Predicated region
    $region38: #{tpu_custom_call.1} parent=1 // pred_check
      _
    $region39: #{tpu_custom_call.1} parent=1 // pred_check_branch
      %1526 = sbr.rel (0) target = $region41
    $region40: #{tpu_custom_call.1} parent=1 // pred_region
      %1527 = dma.done [#allocation5], 4096
    $region41: #{tpu_custom_call.1} parent=1 // pred_fallthru
      _
    // Predicated region
    $region42: #{tpu_custom_call.1} parent=1 // pred_check
      _
    $region43: #{tpu_custom_call.1} parent=1 // pred_check_branch
      %1529 = sbr.rel (0) target = $region45
    $region44: #{tpu_custom_call.1} parent=1 // pred_region
      %1530 = dma.done [#allocation10], 128
    $region45: #{tpu_custom_call.1} parent=1 // pred_fallthru
      _
    // Predicated region
    $region46: #{tpu_custom_call.1} parent=1 // pred_check
      _
    $region47: #{tpu_custom_call.1} parent=1 // pred_check_branch
      %1532 = sbr.rel (0) target = $region49
    $region48: #{tpu_custom_call.1} parent=1 // pred_region
      %1533 = dma.done [#allocation10], 128
    $region49: #{tpu_custom_call.1} parent=1 // pred_fallthru
      _
    %1534 = vsyncpa [#allocation4], 1
    %1535 = vsyncpa [#allocation7], 1
    %1536 = vsyncpa [#allocation5], 1
    %1537 = vsyncpa [#allocation10], 1

</llo_original>
